<compile_context>
chip_gen: v6e
topology: v6e:2x2x1
jax: 0.10.0
libtpu: 0.0.40
codegen_flags: <defaults>
</compile_context>

<pallas_src>
import jax
import jax.numpy as jnp
from jax.experimental import pallas as pl
from jax.experimental.pallas import tpu as pltpu

LANE = 128


def _round_up(x, m):
    return ((x + m - 1) // m) * m


# ----------------------------- Pallas kernels -------------------------------

def gcn1_kernel(a_ref, x_ref, w1_ref, b1_ref, wproj_ref, h1_ref, proj_ref, acc_ref):
    """Layer 1: h1 = relu(A_hat @ (X @ W1) + b1), fused with the node-level
    edge-score projections proj = h1 @ [we_src | we_dst | 0...] (lane-dense)."""
    k = pl.program_id(1)

    @pl.when(k == 0)
    def _():
        acc_ref[...] = jnp.zeros_like(acc_ref)

    # X_tile @ W1 (W1 resident, tiny), then propagate through the A_hat tile (MXU).
    xw = jnp.dot(x_ref[...], w1_ref[...], preferred_element_type=jnp.float32)
    acc_ref[...] += jnp.dot(a_ref[...], xw.astype(a_ref.dtype),
                            preferred_element_type=jnp.float32)

    @pl.when(k == pl.num_programs(1) - 1)
    def _():
        h1 = jnp.maximum(acc_ref[...] + b1_ref[...], 0.0)        # bias + ReLU in f32
        h1_ref[...] = h1.astype(h1_ref.dtype)
        # Edge head folded in: columns 0/1 hold the src/dst projections.
        proj_ref[...] = jnp.dot(h1.astype(wproj_ref.dtype), wproj_ref[...],
                                preferred_element_type=jnp.float32)


def gcn2_kernel(a_ref, h_ref, w2_ref, b2_ref, out_ref, acc_ref):
    """Layer 2: node_output = A_hat @ (h1 @ W2) + b2 (no activation)."""
    k = pl.program_id(1)

    @pl.when(k == 0)
    def _():
        acc_ref[...] = jnp.zeros_like(acc_ref)

    hw = jnp.dot(h_ref[...], w2_ref[...], preferred_element_type=jnp.float32)
    acc_ref[...] += jnp.dot(a_ref[...], hw.astype(a_ref.dtype),
                            preferred_element_type=jnp.float32)

    @pl.when(k == pl.num_programs(1) - 1)
    def _():
        out_ref[...] = acc_ref[...] + b2_ref[...]


# ------------------------------ JAX wrapper ---------------------------------

def gcn_norm_adj(edge_index, num_nodes):
    """PyG GCNConv normalization: drop existing self-loops, scatter-add duplicate
    edges, add one self-loop per node, then D^-1/2 (A + I) D^-1/2."""
    src, dst = edge_index[0], edge_index[1]
    keep = (src != dst).astype(jnp.float32)
    a = jnp.zeros((num_nodes, num_nodes), jnp.float32)
    a = a.at[dst, src].add(keep)                       # duplicates accumulate
    a = a + jnp.eye(num_nodes, dtype=jnp.float32)      # add_remaining_self_loops(fill=1)
    deg = a.sum(axis=1)
    dinv = jnp.where(deg > 0, jax.lax.rsqrt(deg), 0.0)
    return dinv[:, None] * a * dinv[None, :]


def graph_model_forward(x, edge_index, params, *, tile=512):
    """Replicates GraphModel.forward -> {'node_output': [N,C], 'edge_output': [E]}."""
    n, f = x.shape
    h = params["w1"].shape[1]
    c = params["w2"].shape[1]

    h_pad = _round_up(h, LANE)
    c_pad = _round_up(c, LANE)

    n_pad = _round_up(n, LANE)
    tm = tk = min(tile, n_pad)
    n_pad = _round_up(n_pad, tm)
    grid = (n_pad // tm, n_pad // tk)

    # Dense normalized adjacency (bf16 operand, f32 accumulate inside the kernels).
    # TODO(synk): for large N, replace the dense O(N^2) A_hat with a CSR +
    # PrefetchScalarGridSpec gather formulation.
    a_hat = jnp.pad(gcn_norm_adj(edge_index, n),
                    ((0, n_pad - n), (0, n_pad - n))).astype(jnp.bfloat16)
    x_p = jnp.pad(x, ((0, n_pad - n), (0, 0))).astype(jnp.bfloat16)

    # Lane-pad weights/biases.
    w1 = jnp.pad(params["w1"], ((0, 0), (0, h_pad - h))).astype(jnp.bfloat16)
    b1 = jnp.pad(params["b1"], (0, h_pad - h)).reshape(1, h_pad).astype(jnp.float32)
    w2 = jnp.pad(params["w2"], ((0, h_pad - h), (0, c_pad - c))).astype(jnp.bfloat16)
    b2 = jnp.pad(params["b2"], (0, c_pad - c)).reshape(1, c_pad).astype(jnp.float32)

    # Edge head Linear(2H -> 1) as two node-level projection columns (lane-padded).
    we = params["we"].astype(jnp.bfloat16)             # [2H, 1]
    w_proj = jnp.zeros((h_pad, LANE), jnp.bfloat16)
    w_proj = w_proj.at[:h, 0].set(we[:h, 0])
    w_proj = w_proj.at[:h, 1].set(we[h:, 0])
    be = params["be"].reshape(())

    cparams = pltpu.CompilerParams(
        dimension_semantics=("parallel", "arbitrary"),
        vmem_limit_bytes=32 * 1024 * 1024,
    )

    # ----------------- layer 1: h1 = relu(A @ (X W1) + b1) + edge projections
    cost1 = pl.CostEstimate(
        flops=2 * n_pad * n_pad * h_pad + 2 * n_pad * f * h_pad * grid[0]
              + 2 * n_pad * h_pad * LANE,
        transcendentals=0,
        bytes_accessed=a_hat.size * 2 + x_p.size * 2
                       + n_pad * h_pad * 2 + n_pad * LANE * 4,
    )
    h1, proj = pl.pallas_call(
        gcn1_kernel,
        out_shape=(
            jax.ShapeDtypeStruct((n_pad, h_pad), jnp.bfloat16),
            jax.ShapeDtypeStruct((n_pad, LANE), jnp.float32),
        ),
        grid_spec=pltpu.PrefetchScalarGridSpec(
            num_scalar_prefetch=0,
            grid=grid,
            in_specs=[
                pl.BlockSpec((tm, tk), lambda i, k: (i, k)),        # A_hat (streams)
                pl.BlockSpec((tk, f), lambda i, k: (k, 0)),         # X (streams over k)
                pl.BlockSpec((f, h_pad), lambda i, k: (0, 0)),      # W1 (resident)
                pl.BlockSpec((1, h_pad), lambda i, k: (0, 0)),      # b1 (resident)
                pl.BlockSpec((h_pad, LANE), lambda i, k: (0, 0)),   # W_proj (resident)
            ],
            out_specs=(
                pl.BlockSpec((tm, h_pad), lambda i, k: (i, 0)),     # h1
                pl.BlockSpec((tm, LANE), lambda i, k: (i, 0)),      # edge projections
            ),
            scratch_shapes=[pltpu.VMEM((tm, h_pad), jnp.float32)],
        ),
        compiler_params=cparams,
        cost_estimate=cost1,
    )(a_hat, x_p, w1, b1, w_proj)

    # ----------------- layer 2: node_output = A @ (h1 W2) + b2
    cost2 = pl.CostEstimate(
        flops=2 * n_pad * n_pad * c_pad + 2 * n_pad * h_pad * c_pad * grid[0],
        transcendentals=0,
        bytes_accessed=a_hat.size * 2 + h1.size * 2 + n_pad * c_pad * 4,
    )
    node_out = pl.pallas_call(
        gcn2_kernel,
        out_shape=jax.ShapeDtypeStruct((n_pad, c_pad), jnp.float32),
        grid_spec=pltpu.PrefetchScalarGridSpec(
            num_scalar_prefetch=0,
            grid=grid,
            in_specs=[
                pl.BlockSpec((tm, tk), lambda i, k: (i, k)),        # A_hat (streams)
                pl.BlockSpec((tk, h_pad), lambda i, k: (k, 0)),     # h1 (streams over k)
                pl.BlockSpec((h_pad, c_pad), lambda i, k: (0, 0)),  # W2 (resident)
                pl.BlockSpec((1, c_pad), lambda i, k: (0, 0)),      # b2 (resident)
            ],
            out_specs=pl.BlockSpec((tm, c_pad), lambda i, k: (i, 0)),
            scratch_shapes=[pltpu.VMEM((tm, c_pad), jnp.float32)],
        ),
        compiler_params=cparams,
        cost_estimate=cost2,
    )(a_hat, h1, w2, b2)

    # Glue: per-edge score = src projection + dst projection + bias (two scalar gathers).
    src, dst = edge_index[0], edge_index[1]
    edge_output = proj[src, 0] + proj[dst, 1] + be

    return {
        "node_output": node_out[:n, :c],   # [N, C]
        "edge_output": edge_output,        # [E]  (matches .squeeze(-1) in GraphModel)
    }


def init_params(key, f_in, hidden, n_classes):
    k1, k2, k3 = jax.random.split(key, 3)
    return {
        "w1": jax.random.normal(k1, (f_in, hidden), jnp.float32) / jnp.sqrt(f_in),
        "b1": jnp.zeros((hidden,), jnp.float32),
        "w2": jax.random.normal(k2, (hidden, n_classes), jnp.float32) / jnp.sqrt(hidden),
        "b2": jnp.zeros((n_classes,), jnp.float32),
        "we": jax.random.normal(k3, (2 * hidden, 1), jnp.float32) / jnp.sqrt(2 * hidden),
        "be": jnp.zeros((1,), jnp.float32),
    }


def reference_forward(x, edge_index, params):
    """Pure-JAX f32 reference matching GraphModel.forward semantics."""
    a = gcn_norm_adj(edge_index, x.shape[0])
    h1 = jnp.maximum(a @ (x @ params["w1"]) + params["b1"], 0.0)
    node = a @ (h1 @ params["w2"]) + params["b2"]
    src, dst = edge_index[0], edge_index[1]
    ef = jnp.concatenate([h1[src], h1[dst]], axis=-1)
    edge = (ef @ params["we"] + params["be"]).squeeze(-1)
    return {"node_output": node, "edge_output": edge}


if __name__ == "__main__":
    # Small synthetic graph: N=16 nodes, F=8 input features, H=32 hidden, C=4 classes, E=32 edges.
    N, F, H, C, E = 16, 8, 32, 4, 32

    key = jax.random.PRNGKey(0)
    kx, ke, kp = jax.random.split(key, 3)

    x = jax.random.normal(kx, (N, F), jnp.float32)                       # data.x
    edge_index = jax.random.randint(ke, (2, E), 0, N, dtype=jnp.int32)   # data.edge_index
    params = init_params(kp, F, H, C)

    outputs = jax.jit(graph_model_forward)(x, edge_index, params)
    jax.block_until_ready(outputs)

    assert outputs["node_output"].shape == (N, C)
    assert outputs["edge_output"].shape == (E,)

    ref = reference_forward(x, edge_index, params)
    assert bool(jnp.allclose(outputs["node_output"], ref["node_output"], atol=1e-1, rtol=1e-1))
    assert bool(jnp.allclose(outputs["edge_output"], ref["edge_output"], atol=1e-1, rtol=1e-1))

    print("KERNEL_OK")
</pallas_src>

<mosaic_0001>
module attributes {stable_mosaic.version = 11 : i64} {
  func.func private @main(%arg0: i32) attributes {dimension_semantics = [#tpu.dimension_semantics<core_parallel>], iteration_bounds = array<i64: 2>, tpu.core_type = #tpu.core_type<sc_scalar_subcore>, window_params = []} {
    return
  }
}

module attributes {stable_mosaic.version = 11 : i64} {
  func.func private @main(%arg0: i32) attributes {dimension_semantics = [#tpu.dimension_semantics<core_parallel>], iteration_bounds = array<i64: 2>, tpu.core_type = #tpu.core_type<sc_scalar_subcore>, window_params = []} {
    return
  }
}

module attributes {stable_mosaic.version = 11 : i64} {
  func.func @gcn1_kernel(%arg0: i32, %arg1: i32, %arg2: memref<128x128xbf16, #tpu.memory_space<vmem>>, %arg3: memref<128x8xbf16, #tpu.memory_space<vmem>>, %arg4: memref<8x128xbf16, #tpu.memory_space<vmem>>, %arg5: memref<1x128xf32, #tpu.memory_space<vmem>>, %arg6: memref<128x128xbf16, #tpu.memory_space<vmem>>, %arg7: memref<128x128xbf16, #tpu.memory_space<vmem>>, %arg8: memref<128x128xf32, #tpu.memory_space<vmem>>, %arg9: memref<128x128xf32, #tpu.memory_space<vmem>>) attributes {dimension_semantics = [#tpu.dimension_semantics<parallel>, #tpu.dimension_semantics<arbitrary>], iteration_bounds = array<i64: 1, 1>, scalar_prefetch = 0 : i64, scratch_operands = 1 : i64, tpu.core_type = #tpu.core_type<tc>, window_params = [{transform_indices = @transform_0, window_bounds = array<i64: 128, 128>}, {transform_indices = @transform_1, window_bounds = array<i64: 128, 8>}, {pipeline_mode = #tpu.pipeline_mode<synchronous>, transform_indices = @transform_2, window_bounds = array<i64: 8, 128>}, {pipeline_mode = #tpu.pipeline_mode<synchronous>, transform_indices = @transform_3, window_bounds = array<i64: 1, 128>}, {pipeline_mode = #tpu.pipeline_mode<synchronous>, transform_indices = @transform_4, window_bounds = array<i64: 128, 128>}, {transform_indices = @transform_5, window_bounds = array<i64: 128, 128>}, {transform_indices = @transform_6, window_bounds = array<i64: 128, 128>}]} {
    %c0_i32 = arith.constant 0 : i32
    %0 = arith.cmpi eq, %arg1, %c0_i32 : i32
    %1 = arith.extui %0 : i1 to i32
    %c0_i32_0 = arith.constant 0 : i32
    %2 = arith.cmpi ne, %1, %c0_i32_0 : i32
    scf.if %2 {
      %cst_13 = arith.constant 0.000000e+00 : f32
      %15 = vector.broadcast %cst_13 : f32 to vector<128x128xf32>
      %c0_14 = arith.constant 0 : index
      %c0_15 = arith.constant 0 : index
      %16 = vector.load %arg9[%c0_14, %c0_15] : memref<128x128xf32, #tpu.memory_space<vmem>>, vector<128x128xf32>
      tpu.vector_store %arg9[%c0_14, %c0_15], %15 {strides = array<i32>} : memref<128x128xf32, #tpu.memory_space<vmem>>, vector<128x128xf32>,
    } else {
    }
    %c0 = arith.constant 0 : index
    %c0_1 = arith.constant 0 : index
    %3 = vector.load %arg3[%c0, %c0_1] : memref<128x8xbf16, #tpu.memory_space<vmem>>, vector<128x8xbf16>
    %c0_2 = arith.constant 0 : index
    %c0_3 = arith.constant 0 : index
    %4 = vector.load %arg4[%c0_2, %c0_3] : memref<8x128xbf16, #tpu.memory_space<vmem>>, vector<8x128xbf16>
    %cst = arith.constant dense<0.000000e+00> : vector<128x128xf32>
    %5 = tpu.matmul %3, %4, %cst {dimension_numbers = #tpu.dot_dimension_numbers<[1], [0], [0], [1], [0, 0, 1, 1], [], []>} : vector<128x8xbf16>, vector<8x128xbf16>, vector<128x128xf32> -> vector<128x128xf32>
    %c0_4 = arith.constant 0 : index
    %c0_5 = arith.constant 0 : index
    %6 = vector.load %arg9[%c0_4, %c0_5] : memref<128x128xf32, #tpu.memory_space<vmem>>, vector<128x128xf32>
    %c0_6 = arith.constant 0 : index
    %c0_7 = arith.constant 0 : index
    %7 = vector.load %arg2[%c0_6, %c0_7] : memref<128x128xbf16, #tpu.memory_space<vmem>>, vector<128x128xbf16>
    %8 = arith.truncf %5 : vector<128x128xf32> to vector<128x128xbf16>
    %cst_8 = arith.constant dense<0.000000e+00> : vector<128x128xf32>
    %9 = tpu.matmul %7, %8, %cst_8 {dimension_numbers = #tpu.dot_dimension_numbers<[1], [0], [0], [1], [0, 0, 1, 1], [], []>} : vector<128x128xbf16>, vector<128x128xbf16>, vector<128x128xf32> -> vector<128x128xf32>
    %10 = arith.addf %6, %9 : vector<128x128xf32>
    %c0_9 = arith.constant 0 : index
    %c0_10 = arith.constant 0 : index
    %11 = vector.load %arg9[%c0_9, %c0_10] : memref<128x128xf32, #tpu.memory_space<vmem>>, vector<128x128xf32>
    tpu.vector_store %arg9[%c0_9, %c0_10], %10 {strides = array<i32>} : memref<128x128xf32, #tpu.memory_space<vmem>>, vector<128x128xf32>,
    %c0_i32_11 = arith.constant 0 : i32
    %12 = arith.cmpi eq, %arg1, %c0_i32_11 : i32
    %13 = arith.extui %12 : i1 to i32
    %c0_i32_12 = arith.constant 0 : i32
    %14 = arith.cmpi ne, %13, %c0_i32_12 : i32
    scf.if %14 {
      %c0_13 = arith.constant 0 : index
      %c0_14 = arith.constant 0 : index
      %15 = vector.load %arg9[%c0_13, %c0_14] : memref<128x128xf32, #tpu.memory_space<vmem>>, vector<128x128xf32>
      %c0_15 = arith.constant 0 : index
      %c0_16 = arith.constant 0 : index
      %16 = vector.load %arg5[%c0_15, %c0_16] : memref<1x128xf32, #tpu.memory_space<vmem>>, vector<1x128xf32>
      %17 = vector.broadcast %16 : vector<1x128xf32> to vector<128x128xf32>
      %18 = arith.addf %15, %17 : vector<128x128xf32>
      %cst_17 = arith.constant 0.000000e+00 : f32
      %19 = vector.broadcast %cst_17 : f32 to vector<128x128xf32>
      %20 = arith.maximumf %18, %19 : vector<128x128xf32>
      %21 = arith.truncf %20 : vector<128x128xf32> to vector<128x128xbf16>
      %c0_18 = arith.constant 0 : index
      %c0_19 = arith.constant 0 : index
      %22 = vector.load %arg7[%c0_18, %c0_19] : memref<128x128xbf16, #tpu.memory_space<vmem>>, vector<128x128xbf16>
      tpu.vector_store %arg7[%c0_18, %c0_19], %21 {strides = array<i32>} : memref<128x128xbf16, #tpu.memory_space<vmem>>, vector<128x128xbf16>,
      %23 = arith.truncf %20 : vector<128x128xf32> to vector<128x128xbf16>
      %c0_20 = arith.constant 0 : index
      %c0_21 = arith.constant 0 : index
      %24 = vector.load %arg6[%c0_20, %c0_21] : memref<128x128xbf16, #tpu.memory_space<vmem>>, vector<128x128xbf16>
      %cst_22 = arith.constant dense<0.000000e+00> : vector<128x128xf32>
      %25 = tpu.matmul %23, %24, %cst_22 {dimension_numbers = #tpu.dot_dimension_numbers<[1], [0], [0], [1], [0, 0, 1, 1], [], []>} : vector<128x128xbf16>, vector<128x128xbf16>, vector<128x128xf32> -> vector<128x128xf32>
      %c0_23 = arith.constant 0 : index
      %c0_24 = arith.constant 0 : index
      %26 = vector.load %arg8[%c0_23, %c0_24] : memref<128x128xf32, #tpu.memory_space<vmem>>, vector<128x128xf32>
      tpu.vector_store %arg8[%c0_23, %c0_24], %25 {strides = array<i32>} : memref<128x128xf32, #tpu.memory_space<vmem>>, vector<128x128xf32>,
    } else {
    }
    return
  }
  func.func @transform_0(%arg0: i32, %arg1: i32) -> (i32, i32) {
    %c0_i32 = arith.constant 0 : i32
    return %arg0, %arg1 : i32, i32
  }
  func.func @transform_1(%arg0: i32, %arg1: i32) -> (i32, i32) {
    %c0_i32 = arith.constant 0 : i32
    %c0_i32_0 = arith.constant 0 : i32
    return %arg1, %c0_i32 : i32, i32
  }
  func.func @transform_2(%arg0: i32, %arg1: i32) -> (i32, i32) {
    %c0_i32 = arith.constant 0 : i32
    %c0_i32_0 = arith.constant 0 : i32
    %c0_i32_1 = arith.constant 0 : i32
    return %c0_i32, %c0_i32_0 : i32, i32
  }
  func.func @transform_3(%arg0: i32, %arg1: i32) -> (i32, i32) {
    %c0_i32 = arith.constant 0 : i32
    %c0_i32_0 = arith.constant 0 : i32
    %c0_i32_1 = arith.constant 0 : i32
    return %c0_i32, %c0_i32_0 : i32, i32
  }
  func.func @transform_4(%arg0: i32, %arg1: i32) -> (i32, i32) {
    %c0_i32 = arith.constant 0 : i32
    %c0_i32_0 = arith.constant 0 : i32
    %c0_i32_1 = arith.constant 0 : i32
    return %c0_i32, %c0_i32_0 : i32, i32
  }
  func.func @transform_5(%arg0: i32, %arg1: i32) -> (i32, i32) {
    %c0_i32 = arith.constant 0 : i32
    %c0_i32_0 = arith.constant 0 : i32
    return %arg0, %c0_i32 : i32, i32
  }
  func.func @transform_6(%arg0: i32, %arg1: i32) -> (i32, i32) {
    %c0_i32 = arith.constant 0 : i32
    %c0_i32_0 = arith.constant 0 : i32
    return %arg0, %c0_i32 : i32, i32
  }
}

module attributes {stable_mosaic.version = 11 : i64} {
  func.func @gcn2_kernel(%arg0: i32, %arg1: i32, %arg2: memref<128x128xbf16, #tpu.memory_space<vmem>>, %arg3: memref<128x128xbf16, #tpu.memory_space<vmem>>, %arg4: memref<128x128xbf16, #tpu.memory_space<vmem>>, %arg5: memref<1x128xf32, #tpu.memory_space<vmem>>, %arg6: memref<128x128xf32, #tpu.memory_space<vmem>>, %arg7: memref<128x128xf32, #tpu.memory_space<vmem>>) attributes {dimension_semantics = [#tpu.dimension_semantics<parallel>, #tpu.dimension_semantics<arbitrary>], iteration_bounds = array<i64: 1, 1>, scalar_prefetch = 0 : i64, scratch_operands = 1 : i64, tpu.core_type = #tpu.core_type<tc>, window_params = [{transform_indices = @transform_0, window_bounds = array<i64: 128, 128>}, {transform_indices = @transform_1, window_bounds = array<i64: 128, 128>}, {pipeline_mode = #tpu.pipeline_mode<synchronous>, transform_indices = @transform_2, window_bounds = array<i64: 128, 128>}, {pipeline_mode = #tpu.pipeline_mode<synchronous>, transform_indices = @transform_3, window_bounds = array<i64: 1, 128>}, {transform_indices = @transform_4, window_bounds = array<i64: 128, 128>}]} {
    %c0_i32 = arith.constant 0 : i32
    %0 = arith.cmpi eq, %arg1, %c0_i32 : i32
    %1 = arith.extui %0 : i1 to i32
    %c0_i32_0 = arith.constant 0 : i32
    %2 = arith.cmpi ne, %1, %c0_i32_0 : i32
    scf.if %2 {
      %cst_13 = arith.constant 0.000000e+00 : f32
      %15 = vector.broadcast %cst_13 : f32 to vector<128x128xf32>
      %c0_14 = arith.constant 0 : index
      %c0_15 = arith.constant 0 : index
      %16 = vector.load %arg7[%c0_14, %c0_15] : memref<128x128xf32, #tpu.memory_space<vmem>>, vector<128x128xf32>
      tpu.vector_store %arg7[%c0_14, %c0_15], %15 {strides = array<i32>} : memref<128x128xf32, #tpu.memory_space<vmem>>, vector<128x128xf32>,
    } else {
    }
    %c0 = arith.constant 0 : index
    %c0_1 = arith.constant 0 : index
    %3 = vector.load %arg3[%c0, %c0_1] : memref<128x128xbf16, #tpu.memory_space<vmem>>, vector<128x128xbf16>
    %c0_2 = arith.constant 0 : index
    %c0_3 = arith.constant 0 : index
    %4 = vector.load %arg4[%c0_2, %c0_3] : memref<128x128xbf16, #tpu.memory_space<vmem>>, vector<128x128xbf16>
    %cst = arith.constant dense<0.000000e+00> : vector<128x128xf32>
    %5 = tpu.matmul %3, %4, %cst {dimension_numbers = #tpu.dot_dimension_numbers<[1], [0], [0], [1], [0, 0, 1, 1], [], []>} : vector<128x128xbf16>, vector<128x128xbf16>, vector<128x128xf32> -> vector<128x128xf32>
    %c0_4 = arith.constant 0 : index
    %c0_5 = arith.constant 0 : index
    %6 = vector.load %arg7[%c0_4, %c0_5] : memref<128x128xf32, #tpu.memory_space<vmem>>, vector<128x128xf32>
    %c0_6 = arith.constant 0 : index
    %c0_7 = arith.constant 0 : index
    %7 = vector.load %arg2[%c0_6, %c0_7] : memref<128x128xbf16, #tpu.memory_space<vmem>>, vector<128x128xbf16>
    %8 = arith.truncf %5 : vector<128x128xf32> to vector<128x128xbf16>
    %cst_8 = arith.constant dense<0.000000e+00> : vector<128x128xf32>
    %9 = tpu.matmul %7, %8, %cst_8 {dimension_numbers = #tpu.dot_dimension_numbers<[1], [0], [0], [1], [0, 0, 1, 1], [], []>} : vector<128x128xbf16>, vector<128x128xbf16>, vector<128x128xf32> -> vector<128x128xf32>
    %10 = arith.addf %6, %9 : vector<128x128xf32>
    %c0_9 = arith.constant 0 : index
    %c0_10 = arith.constant 0 : index
    %11 = vector.load %arg7[%c0_9, %c0_10] : memref<128x128xf32, #tpu.memory_space<vmem>>, vector<128x128xf32>
    tpu.vector_store %arg7[%c0_9, %c0_10], %10 {strides = array<i32>} : memref<128x128xf32, #tpu.memory_space<vmem>>, vector<128x128xf32>,
    %c0_i32_11 = arith.constant 0 : i32
    %12 = arith.cmpi eq, %arg1, %c0_i32_11 : i32
    %13 = arith.extui %12 : i1 to i32
    %c0_i32_12 = arith.constant 0 : i32
    %14 = arith.cmpi ne, %13, %c0_i32_12 : i32
    scf.if %14 {
      %c0_13 = arith.constant 0 : index
      %c0_14 = arith.constant 0 : index
      %15 = vector.load %arg7[%c0_13, %c0_14] : memref<128x128xf32, #tpu.memory_space<vmem>>, vector<128x128xf32>
      %c0_15 = arith.constant 0 : index
      %c0_16 = arith.constant 0 : index
      %16 = vector.load %arg5[%c0_15, %c0_16] : memref<1x128xf32, #tpu.memory_space<vmem>>, vector<1x128xf32>
      %17 = vector.broadcast %16 : vector<1x128xf32> to vector<128x128xf32>
      %18 = arith.addf %15, %17 : vector<128x128xf32>
      %c0_17 = arith.constant 0 : index
      %c0_18 = arith.constant 0 : index
      %19 = vector.load %arg6[%c0_17, %c0_18] : memref<128x128xf32, #tpu.memory_space<vmem>>, vector<128x128xf32>
      tpu.vector_store %arg6[%c0_17, %c0_18], %18 {strides = array<i32>} : memref<128x128xf32, #tpu.memory_space<vmem>>, vector<128x128xf32>,
    } else {
    }
    return
  }
  func.func @transform_0(%arg0: i32, %arg1: i32) -> (i32, i32) {
    %c0_i32 = arith.constant 0 : i32
    return %arg0, %arg1 : i32, i32
  }
  func.func @transform_1(%arg0: i32, %arg1: i32) -> (i32, i32) {
    %c0_i32 = arith.constant 0 : i32
    %c0_i32_0 = arith.constant 0 : i32
    return %arg1, %c0_i32 : i32, i32
  }
  func.func @transform_2(%arg0: i32, %arg1: i32) -> (i32, i32) {
    %c0_i32 = arith.constant 0 : i32
    %c0_i32_0 = arith.constant 0 : i32
    %c0_i32_1 = arith.constant 0 : i32
    return %c0_i32, %c0_i32_0 : i32, i32
  }
  func.func @transform_3(%arg0: i32, %arg1: i32) -> (i32, i32) {
    %c0_i32 = arith.constant 0 : i32
    %c0_i32_0 = arith.constant 0 : i32
    %c0_i32_1 = arith.constant 0 : i32
    return %c0_i32, %c0_i32_0 : i32, i32
  }
  func.func @transform_4(%arg0: i32, %arg1: i32) -> (i32, i32) {
    %c0_i32 = arith.constant 0 : i32
    %c0_i32_0 = arith.constant 0 : i32
    return %arg0, %c0_i32 : i32, i32
  }
}

</mosaic_0001>

<llo_original>
// kernel: graph_model_forward.3
$region0: #{graph_model_forward.3}
  #allocation0 [shape = 'u32[]', space=smem, size = 0x4, offset = 0x4, fixed_abs, tag = 'smem constant byte address 0x4 - core index']
  #allocation1 [shape = 'u32[144,128]{1,0:T(1,128)}', space=vmem, size = 0x12000, scoped, tag = 'internal scratch']
  #allocation2 [shape = 'f32[128,128]{1,0:T(8,128)}', space=vmem, size = 0x10000, scoped, tag = 'scratch operand']
  %s0 = inlined_call_operand.vmem [shape: bf16[128,128], index: 0, kind: input, shape index: {}]
  %s1 = inlined_call_operand.vmem [shape: bf16[128,128], index: 1, kind: input, shape index: {}]
  %s2 = inlined_call_operand.vmem [shape: bf16[128,128], index: 2, kind: input, shape index: {}]
  %s3 = inlined_call_operand.vmem [shape: f32[1,128], index: 3, kind: input, shape index: {}]
  %s4 = inlined_call_operand.vmem [shape: f32[128,128], index: 4, kind: output, shape index: {}]
  %s5 = sld [smem:[#allocation0]]
  $region34: #{graph_model_forward.3} parent=0
    _
  %s7 = ssub.s32 1, %s5
  %s8 = scalar_select 0, %s7, %s5
  // Predicated region
  $region2: #{graph_model_forward.3} parent=0 // pred_check
    _
  $region3: #{graph_model_forward.3} parent=0 // pred_check_branch
    %10 = sbr.rel (0) target = $region5
  $region4: #{graph_model_forward.3} parent=0 // pred_region
    _
  $region5: #{graph_model_forward.3} parent=0 // pred_fallthru
    _
  // Predicated region
  $region6: #{graph_model_forward.3} parent=0 // pred_check
    _
  $region7: #{graph_model_forward.3} parent=0 // pred_check_branch
    %12 = sbr.rel (0) target = $region9
  $region8: #{graph_model_forward.3} parent=0 // pred_region
    _
  $region9: #{graph_model_forward.3} parent=0 // pred_fallthru
    _
  // Predicated region
  $region10: #{graph_model_forward.3} parent=0 // pred_check
    _
  $region11: #{graph_model_forward.3} parent=0 // pred_check_branch
    %14 = sbr.rel (0) target = $region13
  $region12: #{graph_model_forward.3} parent=0 // pred_region
    _
  $region13: #{graph_model_forward.3} parent=0 // pred_fallthru
    _
  // Predicated region
  $region14: #{graph_model_forward.3} parent=0 // pred_check
    _
  $region15: #{graph_model_forward.3} parent=0 // pred_check_branch
    %16 = sbr.rel (0) target = $region17
  $region16: #{graph_model_forward.3} parent=0 // pred_region
    _
  $region17: #{graph_model_forward.3} parent=0 // pred_fallthru
    _
  %p18 = scmp.eq.s32.totalorder 0, 0
  // Predicated region
  $region18: #{graph_model_forward.3} parent=0 // pred_check
    %p19 = pneg %p18
  $region19: #{graph_model_forward.3} parent=0 // pred_check_branch
    %21 = sbr.rel (%p19) target = $region21
  $region20: #{graph_model_forward.3} parent=0 // pred_region
    %22 = vst [vmem:[#allocation2] sm:$0xff] 0.0
    %23 = vst [vmem:[#allocation2 + $0x8] sm:$0xff] 0.0
    %24 = vst [vmem:[#allocation2 + $0x10] sm:$0xff] 0.0
    %25 = vst [vmem:[#allocation2 + $0x18] sm:$0xff] 0.0
    %26 = vst [vmem:[#allocation2 + $0x20] sm:$0xff] 0.0
    %27 = vst [vmem:[#allocation2 + $0x28] sm:$0xff] 0.0
    %28 = vst [vmem:[#allocation2 + $0x30] sm:$0xff] 0.0
    %29 = vst [vmem:[#allocation2 + $0x38] sm:$0xff] 0.0
    %30 = vst [vmem:[#allocation2 + $0x40] sm:$0xff] 0.0
    %31 = vst [vmem:[#allocation2 + $0x48] sm:$0xff] 0.0
    %32 = vst [vmem:[#allocation2 + $0x50] sm:$0xff] 0.0
    %33 = vst [vmem:[#allocation2 + $0x58] sm:$0xff] 0.0
    %34 = vst [vmem:[#allocation2 + $0x60] sm:$0xff] 0.0
    %35 = vst [vmem:[#allocation2 + $0x68] sm:$0xff] 0.0
    %36 = vst [vmem:[#allocation2 + $0x70] sm:$0xff] 0.0
    %37 = vst [vmem:[#allocation2 + $0x78] sm:$0xff] 0.0
  $region21: #{graph_model_forward.3} parent=0 // pred_fallthru
    _
  %v38 = vld [vmem:[%s1] sm:$0xf]
  %v39 = vld [vmem:[%s1 + $0x4] sm:$0xf]
  %v40 = vld [vmem:[%s1 + $0x8] sm:$0xf]
  %v41 = vld [vmem:[%s1 + $0xc] sm:$0xf]
  %v42 = vld [vmem:[%s1 + $0x10] sm:$0xf]
  %v43 = vld [vmem:[%s1 + $0x14] sm:$0xf]
  %v44 = vld [vmem:[%s1 + $0x18] sm:$0xf]
  %v45 = vld [vmem:[%s1 + $0x1c] sm:$0xf]
  %v46 = vld [vmem:[%s1 + $0x20] sm:$0xf]
  %v47 = vld [vmem:[%s1 + $0x24] sm:$0xf]
  %v48 = vld [vmem:[%s1 + $0x28] sm:$0xf]
  %v49 = vld [vmem:[%s1 + $0x2c] sm:$0xf]
  %v50 = vld [vmem:[%s1 + $0x30] sm:$0xf]
  %v51 = vld [vmem:[%s1 + $0x34] sm:$0xf]
  %v52 = vld [vmem:[%s1 + $0x38] sm:$0xf]
  %v53 = vld [vmem:[%s1 + $0x3c] sm:$0xf]
  %v54 = vld [vmem:[%s2] sm:$0xf]
  %v55 = vld [vmem:[%s2 + $0x4] sm:$0xf]
  %v56 = vld [vmem:[%s2 + $0x8] sm:$0xf]
  %v57 = vld [vmem:[%s2 + $0xc] sm:$0xf]
  %v58 = vld [vmem:[%s2 + $0x10] sm:$0xf]
  %v59 = vld [vmem:[%s2 + $0x14] sm:$0xf]
  %v60 = vld [vmem:[%s2 + $0x18] sm:$0xf]
  %v61 = vld [vmem:[%s2 + $0x1c] sm:$0xf]
  %v62 = vld [vmem:[%s2 + $0x20] sm:$0xf]
  %v63 = vld [vmem:[%s2 + $0x24] sm:$0xf]
  %v64 = vld [vmem:[%s2 + $0x28] sm:$0xf]
  %v65 = vld [vmem:[%s2 + $0x2c] sm:$0xf]
  %v66 = vld [vmem:[%s2 + $0x30] sm:$0xf]
  %v67 = vld [vmem:[%s2 + $0x34] sm:$0xf]
  %v68 = vld [vmem:[%s2 + $0x38] sm:$0xf]
  %v69 = vld [vmem:[%s2 + $0x3c] sm:$0xf]
  %v86 = vunpack.c.l.b16 %v38
  %v87 = vunpack.c.l.b16 %v39
  %v88 = vunpack.c.l.b16 %v40
  %v89 = vunpack.c.l.b16 %v41
  %v90 = vunpack.c.l.b16 %v42
  %v91 = vunpack.c.l.b16 %v43
  %v92 = vunpack.c.l.b16 %v44
  %v93 = vunpack.c.l.b16 %v45
  %v94 = vunpack.c.l.b16 %v46
  %v95 = vunpack.c.l.b16 %v47
  %v96 = vunpack.c.l.b16 %v48
  %v97 = vunpack.c.l.b16 %v49
  %v98 = vunpack.c.l.b16 %v50
  %v99 = vunpack.c.l.b16 %v51
  %v100 = vunpack.c.l.b16 %v52
  %v101 = vunpack.c.l.b16 %v53
  %v102 = vpack.c.b16 %v87, %v86
  %v103 = vpack.c.b16 %v89, %v88
  %v104 = vpack.c.b16 %v91, %v90
  %v105 = vpack.c.b16 %v93, %v92
  %v106 = vpack.c.b16 %v95, %v94
  %v107 = vpack.c.b16 %v97, %v96
  %v108 = vpack.c.b16 %v99, %v98
  %v109 = vpack.c.b16 %v101, %v100
  %v134 = vunpack.c.l.b16 %v54
  %v135 = vunpack.c.l.b16 %v55
  %v136 = vunpack.c.l.b16 %v56
  %v137 = vunpack.c.l.b16 %v57
  %v138 = vunpack.c.l.b16 %v58
  %v139 = vunpack.c.l.b16 %v59
  %v140 = vunpack.c.l.b16 %v60
  %v141 = vunpack.c.l.b16 %v61
  %v142 = vunpack.c.l.b16 %v62
  %v143 = vunpack.c.l.b16 %v63
  %v144 = vunpack.c.l.b16 %v64
  %v145 = vunpack.c.l.b16 %v65
  %v146 = vunpack.c.l.b16 %v66
  %v147 = vunpack.c.l.b16 %v67
  %v148 = vunpack.c.l.b16 %v68
  %v149 = vunpack.c.l.b16 %v69
  %v150 = vpack.c.b16 %v135, %v134
  %v151 = vpack.c.b16 %v137, %v136
  %v152 = vpack.c.b16 %v139, %v138
  %v153 = vpack.c.b16 %v141, %v140
  %v154 = vpack.c.b16 %v143, %v142
  %v155 = vpack.c.b16 %v145, %v144
  %v156 = vpack.c.b16 %v147, %v146
  %v157 = vpack.c.b16 %v149, %v148
  %166 = vmatprep.subr.bf16.mxu0 0
  %167 = vmatpush1.bf16.msra.mxu0 %v157
  %168 = vmatprep.subr.bf16.mxu0 0
  %169 = vmatpush1.bf16.msra.mxu0 %v156
  %170 = vmatprep.subr.bf16.mxu0 0
  %171 = vmatpush1.bf16.msra.mxu0 %v155
  %172 = vmatprep.subr.bf16.mxu0 0
  %173 = vmatpush1.bf16.msra.mxu0 %v154
  %174 = vmatprep.subr.bf16.mxu0 0
  %175 = vmatpush1.bf16.msra.mxu0 %v153
  %176 = vmatprep.subr.bf16.mxu0 0
  %177 = vmatpush1.bf16.msra.mxu0 %v152
  %178 = vmatprep.subr.bf16.mxu0 0
  %179 = vmatpush1.bf16.msra.mxu0 %v151
  %180 = vmatprep.subr.bf16.mxu0 0
  %181 = vmatpush1.bf16.msra.mxu0 %v150
  %182 = vmatprep.subr.bf16.mxu0 0
  %183 = vmatpush2.bf16.msra.mxu0 0
  %184 = vmatprep.subr.bf16.mxu0 0
  %185 = vmatpush2.bf16.msra.mxu0 0
  %186 = vmatprep.subr.bf16.mxu0 0
  %187 = vmatpush2.bf16.msra.mxu0 0
  %188 = vmatprep.subr.bf16.mxu0 0
  %189 = vmatpush2.bf16.msra.mxu0 0
  %190 = vmatprep.subr.bf16.mxu0 0
  %191 = vmatpush2.bf16.msra.mxu0 0
  %192 = vmatprep.subr.bf16.mxu0 0
  %193 = vmatpush2.bf16.msra.mxu0 0
  %194 = vmatprep.subr.bf16.mxu0 0
  %195 = vmatpush2.bf16.msra.mxu0 0
  %196 = vmatprep.subr.bf16.mxu0 0
  %197 = vmatpush2.bf16.msra.mxu0 0
  %198 = vmatprep.mubr.bf16.mxu0 0
  %199 = vmatmul.mubr.bf16.gmra.mxu0 %v102
  %v200 = vpop.f32.mrf.mxu0
  %v201 = vadd.f32 0.0, %v200
  %v202 = vpop.f32.mrf.mxu0
  %v203 = vpop.f32.mrf.mxu0
  %v204 = vadd.f32 0.0, %v203
  %v205 = vpop.f32.mrf.mxu0
  %206 = vmatprep.mubr.bf16.mxu0 0
  %207 = vmatmul.mubr.bf16.gmra.mxu0 %v103
  %v208 = vpop.f32.mrf.mxu0
  %v209 = vadd.f32 0.0, %v208
  %v210 = vpop.f32.mrf.mxu0
  %v211 = vpop.f32.mrf.mxu0
  %v212 = vadd.f32 0.0, %v211
  %v213 = vpop.f32.mrf.mxu0
  %214 = vmatprep.mubr.bf16.mxu0 0
  %215 = vmatmul.mubr.bf16.gmra.mxu0 %v104
  %v216 = vpop.f32.mrf.mxu0
  %v217 = vadd.f32 0.0, %v216
  %v218 = vpop.f32.mrf.mxu0
  %v219 = vpop.f32.mrf.mxu0
  %v220 = vadd.f32 0.0, %v219
  %v221 = vpop.f32.mrf.mxu0
  %222 = vmatprep.mubr.bf16.mxu0 0
  %223 = vmatmul.mubr.bf16.gmra.mxu0 %v105
  %v224 = vpop.f32.mrf.mxu0
  %v225 = vadd.f32 0.0, %v224
  %v226 = vpop.f32.mrf.mxu0
  %v227 = vpop.f32.mrf.mxu0
  %v228 = vadd.f32 0.0, %v227
  %v229 = vpop.f32.mrf.mxu0
  %230 = vmatprep.mubr.bf16.mxu0 0
  %231 = vmatmul.mubr.bf16.gmra.mxu0 %v106
  %v232 = vpop.f32.mrf.mxu0
  %v233 = vadd.f32 0.0, %v232
  %v234 = vpop.f32.mrf.mxu0
  %v235 = vpop.f32.mrf.mxu0
  %v236 = vadd.f32 0.0, %v235
  %v237 = vpop.f32.mrf.mxu0
  %238 = vmatprep.mubr.bf16.mxu0 0
  %239 = vmatmul.mubr.bf16.gmra.mxu0 %v107
  %v240 = vpop.f32.mrf.mxu0
  %v241 = vadd.f32 0.0, %v240
  %v242 = vpop.f32.mrf.mxu0
  %v243 = vpop.f32.mrf.mxu0
  %v244 = vadd.f32 0.0, %v243
  %v245 = vpop.f32.mrf.mxu0
  %246 = vmatprep.mubr.bf16.mxu0 0
  %247 = vmatmul.mubr.bf16.gmra.mxu0 %v108
  %v248 = vpop.f32.mrf.mxu0
  %v249 = vadd.f32 0.0, %v248
  %v250 = vpop.f32.mrf.mxu0
  %v251 = vpop.f32.mrf.mxu0
  %v252 = vadd.f32 0.0, %v251
  %v253 = vpop.f32.mrf.mxu0
  %254 = vmatprep.mubr.bf16.mxu0 0
  %255 = vmatmul.mubr.bf16.gmra.mxu0 %v109
  %v256 = vpop.f32.mrf.mxu0
  %v257 = vadd.f32 0.0, %v256
  %v258 = vpop.f32.mrf.mxu0
  %v259 = vpop.f32.mrf.mxu0
  %v260 = vadd.f32 0.0, %v259
  %v261 = vpop.f32.mrf.mxu0
  %262 = vdwg.mxu0
  %v263 = vld [vmem:[#allocation2] sm:$0xff]
  %v264 = vld [vmem:[#allocation2 + $0x8] sm:$0xff]
  %v265 = vld [vmem:[#allocation2 + $0x10] sm:$0xff]
  %v266 = vld [vmem:[#allocation2 + $0x18] sm:$0xff]
  %v267 = vld [vmem:[#allocation2 + $0x20] sm:$0xff]
  %v268 = vld [vmem:[#allocation2 + $0x28] sm:$0xff]
  %v269 = vld [vmem:[#allocation2 + $0x30] sm:$0xff]
  %v270 = vld [vmem:[#allocation2 + $0x38] sm:$0xff]
  %v271 = vld [vmem:[#allocation2 + $0x40] sm:$0xff]
  %v272 = vld [vmem:[#allocation2 + $0x48] sm:$0xff]
  %v273 = vld [vmem:[#allocation2 + $0x50] sm:$0xff]
  %v274 = vld [vmem:[#allocation2 + $0x58] sm:$0xff]
  %v275 = vld [vmem:[#allocation2 + $0x60] sm:$0xff]
  %v276 = vld [vmem:[#allocation2 + $0x68] sm:$0xff]
  %v277 = vld [vmem:[#allocation2 + $0x70] sm:$0xff]
  %v278 = vld [vmem:[#allocation2 + $0x78] sm:$0xff]
  %v279 = vld [vmem:[%s0] sm:$0xf]
  %v280 = vld [vmem:[%s0 + $0x4] sm:$0xf]
  %v281 = vld [vmem:[%s0 + $0x8] sm:$0xf]
  %v282 = vld [vmem:[%s0 + $0xc] sm:$0xf]
  %v283 = vld [vmem:[%s0 + $0x10] sm:$0xf]
  %v284 = vld [vmem:[%s0 + $0x14] sm:$0xf]
  %v285 = vld [vmem:[%s0 + $0x18] sm:$0xf]
  %v286 = vld [vmem:[%s0 + $0x1c] sm:$0xf]
  %v287 = vld [vmem:[%s0 + $0x20] sm:$0xf]
  %v288 = vld [vmem:[%s0 + $0x24] sm:$0xf]
  %v289 = vld [vmem:[%s0 + $0x28] sm:$0xf]
  %v290 = vld [vmem:[%s0 + $0x2c] sm:$0xf]
  %v291 = vld [vmem:[%s0 + $0x30] sm:$0xf]
  %v292 = vld [vmem:[%s0 + $0x34] sm:$0xf]
  %v293 = vld [vmem:[%s0 + $0x38] sm:$0xf]
  %v294 = vld [vmem:[%s0 + $0x3c] sm:$0xf]
  %v295 = vpack.c.bf16 %v204, %v201
  %v296 = vpack.c.bf16 %v212, %v209
  %v297 = vpack.c.bf16 %v220, %v217
  %v298 = vpack.c.bf16 %v228, %v225
  %v299 = vpack.c.bf16 %v236, %v233
  %v300 = vpack.c.bf16 %v244, %v241
  %v301 = vpack.c.bf16 %v252, %v249
  %v302 = vpack.c.bf16 %v260, %v257
  %v319 = vunpack.c.l.b16 %v279
  %v320 = vunpack.c.l.b16 %v280
  %v321 = vunpack.c.l.b16 %v281
  %v322 = vunpack.c.l.b16 %v282
  %v323 = vunpack.c.l.b16 %v283
  %v324 = vunpack.c.l.b16 %v284
  %v325 = vunpack.c.l.b16 %v285
  %v326 = vunpack.c.l.b16 %v286
  %v327 = vunpack.c.l.b16 %v287
  %v328 = vunpack.c.l.b16 %v288
  %v329 = vunpack.c.l.b16 %v289
  %v330 = vunpack.c.l.b16 %v290
  %v331 = vunpack.c.l.b16 %v291
  %v332 = vunpack.c.l.b16 %v292
  %v333 = vunpack.c.l.b16 %v293
  %v334 = vunpack.c.l.b16 %v294
  %v335 = vpack.c.b16 %v320, %v319
  %v336 = vpack.c.b16 %v322, %v321
  %v337 = vpack.c.b16 %v324, %v323
  %v338 = vpack.c.b16 %v326, %v325
  %v339 = vpack.c.b16 %v328, %v327
  %v340 = vpack.c.b16 %v330, %v329
  %v341 = vpack.c.b16 %v332, %v331
  %v342 = vpack.c.b16 %v334, %v333
  %351 = vmatprep.subr.bf16.mxu0 0
  %352 = vmatpush1.bf16.msra.mxu0 %v302
  %353 = vmatprep.subr.bf16.mxu0 0
  %354 = vmatpush1.bf16.msra.mxu0 %v301
  %355 = vmatprep.subr.bf16.mxu0 0
  %356 = vmatpush1.bf16.msra.mxu0 %v300
  %357 = vmatprep.subr.bf16.mxu0 0
  %358 = vmatpush1.bf16.msra.mxu0 %v299
  %359 = vmatprep.subr.bf16.mxu0 0
  %360 = vmatpush1.bf16.msra.mxu0 %v298
  %361 = vmatprep.subr.bf16.mxu0 0
  %362 = vmatpush1.bf16.msra.mxu0 %v297
  %363 = vmatprep.subr.bf16.mxu0 0
  %364 = vmatpush1.bf16.msra.mxu0 %v296
  %365 = vmatprep.subr.bf16.mxu0 0
  %366 = vmatpush1.bf16.msra.mxu0 %v295
  %367 = vmatprep.subr.bf16.mxu0 0
  %368 = vmatpush2.bf16.msra.mxu0 0
  %369 = vmatprep.subr.bf16.mxu0 0
  %370 = vmatpush2.bf16.msra.mxu0 0
  %371 = vmatprep.subr.bf16.mxu0 0
  %372 = vmatpush2.bf16.msra.mxu0 0
  %373 = vmatprep.subr.bf16.mxu0 0
  %374 = vmatpush2.bf16.msra.mxu0 0
  %375 = vmatprep.subr.bf16.mxu0 0
  %376 = vmatpush2.bf16.msra.mxu0 0
  %377 = vmatprep.subr.bf16.mxu0 0
  %378 = vmatpush2.bf16.msra.mxu0 0
  %379 = vmatprep.subr.bf16.mxu0 0
  %380 = vmatpush2.bf16.msra.mxu0 0
  %381 = vmatprep.subr.bf16.mxu0 0
  %382 = vmatpush2.bf16.msra.mxu0 0
  %383 = vmatprep.mubr.bf16.mxu0 0
  %384 = vmatmul.mubr.bf16.gmra.mxu0 %v335
  %v385 = vpop.f32.mrf.mxu0
  %v386 = vadd.f32 0.0, %v385
  %v387 = vpop.f32.mrf.mxu0
  %v388 = vpop.f32.mrf.mxu0
  %v389 = vadd.f32 0.0, %v388
  %v390 = vpop.f32.mrf.mxu0
  %391 = vmatprep.mubr.bf16.mxu0 0
  %392 = vmatmul.mubr.bf16.gmra.mxu0 %v336
  %v393 = vpop.f32.mrf.mxu0
  %v394 = vadd.f32 0.0, %v393
  %v395 = vpop.f32.mrf.mxu0
  %v396 = vpop.f32.mrf.mxu0
  %v397 = vadd.f32 0.0, %v396
  %v398 = vpop.f32.mrf.mxu0
  %399 = vmatprep.mubr.bf16.mxu0 0
  %400 = vmatmul.mubr.bf16.gmra.mxu0 %v337
  %v401 = vpop.f32.mrf.mxu0
  %v402 = vadd.f32 0.0, %v401
  %v403 = vpop.f32.mrf.mxu0
  %v404 = vpop.f32.mrf.mxu0
  %v405 = vadd.f32 0.0, %v404
  %v406 = vpop.f32.mrf.mxu0
  %407 = vmatprep.mubr.bf16.mxu0 0
  %408 = vmatmul.mubr.bf16.gmra.mxu0 %v338
  %v409 = vpop.f32.mrf.mxu0
  %v410 = vadd.f32 0.0, %v409
  %v411 = vpop.f32.mrf.mxu0
  %v412 = vpop.f32.mrf.mxu0
  %v413 = vadd.f32 0.0, %v412
  %v414 = vpop.f32.mrf.mxu0
  %415 = vmatprep.mubr.bf16.mxu0 0
  %416 = vmatmul.mubr.bf16.gmra.mxu0 %v339
  %v417 = vpop.f32.mrf.mxu0
  %v418 = vadd.f32 0.0, %v417
  %v419 = vpop.f32.mrf.mxu0
  %v420 = vpop.f32.mrf.mxu0
  %v421 = vadd.f32 0.0, %v420
  %v422 = vpop.f32.mrf.mxu0
  %423 = vmatprep.mubr.bf16.mxu0 0
  %424 = vmatmul.mubr.bf16.gmra.mxu0 %v340
  %v425 = vpop.f32.mrf.mxu0
  %v426 = vadd.f32 0.0, %v425
  %v427 = vpop.f32.mrf.mxu0
  %v428 = vpop.f32.mrf.mxu0
  %v429 = vadd.f32 0.0, %v428
  %v430 = vpop.f32.mrf.mxu0
  %431 = vmatprep.mubr.bf16.mxu0 0
  %432 = vmatmul.mubr.bf16.gmra.mxu0 %v341
  %v433 = vpop.f32.mrf.mxu0
  %v434 = vadd.f32 0.0, %v433
  %v435 = vpop.f32.mrf.mxu0
  %v436 = vpop.f32.mrf.mxu0
  %v437 = vadd.f32 0.0, %v436
  %v438 = vpop.f32.mrf.mxu0
  %439 = vmatprep.mubr.bf16.mxu0 0
  %440 = vmatmul.mubr.bf16.gmra.mxu0 %v342
  %v441 = vpop.f32.mrf.mxu0
  %v442 = vadd.f32 0.0, %v441
  %v443 = vpop.f32.mrf.mxu0
  %v444 = vpop.f32.mrf.mxu0
  %v445 = vadd.f32 0.0, %v444
  %v446 = vpop.f32.mrf.mxu0
  %447 = vdwg.mxu0
  %v448 = vadd.f32 %v263, %v386
  %v449 = vadd.f32 %v264, %v389
  %v450 = vadd.f32 %v265, %v394
  %v451 = vadd.f32 %v266, %v397
  %v452 = vadd.f32 %v267, %v402
  %v453 = vadd.f32 %v268, %v405
  %v454 = vadd.f32 %v269, %v410
  %v455 = vadd.f32 %v270, %v413
  %v456 = vadd.f32 %v271, %v418
  %v457 = vadd.f32 %v272, %v421
  %v458 = vadd.f32 %v273, %v426
  %v459 = vadd.f32 %v274, %v429
  %v460 = vadd.f32 %v275, %v434
  %v461 = vadd.f32 %v276, %v437
  %v462 = vadd.f32 %v277, %v442
  %v463 = vadd.f32 %v278, %v445
  %464 = vst [vmem:[#allocation2] sm:$0xff] %v448
  %465 = vst [vmem:[#allocation2 + $0x8] sm:$0xff] %v449
  %466 = vst [vmem:[#allocation2 + $0x10] sm:$0xff] %v450
  %467 = vst [vmem:[#allocation2 + $0x18] sm:$0xff] %v451
  %468 = vst [vmem:[#allocation2 + $0x20] sm:$0xff] %v452
  %469 = vst [vmem:[#allocation2 + $0x28] sm:$0xff] %v453
  %470 = vst [vmem:[#allocation2 + $0x30] sm:$0xff] %v454
  %471 = vst [vmem:[#allocation2 + $0x38] sm:$0xff] %v455
  %472 = vst [vmem:[#allocation2 + $0x40] sm:$0xff] %v456
  %473 = vst [vmem:[#allocation2 + $0x48] sm:$0xff] %v457
  %474 = vst [vmem:[#allocation2 + $0x50] sm:$0xff] %v458
  %475 = vst [vmem:[#allocation2 + $0x58] sm:$0xff] %v459
  %476 = vst [vmem:[#allocation2 + $0x60] sm:$0xff] %v460
  %477 = vst [vmem:[#allocation2 + $0x68] sm:$0xff] %v461
  %478 = vst [vmem:[#allocation2 + $0x70] sm:$0xff] %v462
  %479 = vst [vmem:[#allocation2 + $0x78] sm:$0xff] %v463
  // Predicated region
  $region22: #{graph_model_forward.3} parent=0 // pred_check
    %p480 = pneg %p18
  $region23: #{graph_model_forward.3} parent=0 // pred_check_branch
    %482 = sbr.rel (%p480) target = $region25
  $region24: #{graph_model_forward.3} parent=0 // pred_region
    %v483 = vld [vmem:[#allocation2] sm:$0xff]
    %v484 = vld [vmem:[#allocation2 + $0x8] sm:$0xff]
    %v485 = vld [vmem:[#allocation2 + $0x10] sm:$0xff]
    %v486 = vld [vmem:[#allocation2 + $0x18] sm:$0xff]
    %v487 = vld [vmem:[#allocation2 + $0x20] sm:$0xff]
    %v488 = vld [vmem:[#allocation2 + $0x28] sm:$0xff]
    %v489 = vld [vmem:[#allocation2 + $0x30] sm:$0xff]
    %v490 = vld [vmem:[#allocation2 + $0x38] sm:$0xff]
    %v491 = vld [vmem:[#allocation2 + $0x40] sm:$0xff]
    %v492 = vld [vmem:[#allocation2 + $0x48] sm:$0xff]
    %v493 = vld [vmem:[#allocation2 + $0x50] sm:$0xff]
    %v494 = vld [vmem:[#allocation2 + $0x58] sm:$0xff]
    %v495 = vld [vmem:[#allocation2 + $0x60] sm:$0xff]
    %v496 = vld [vmem:[#allocation2 + $0x68] sm:$0xff]
    %v497 = vld [vmem:[#allocation2 + $0x70] sm:$0xff]
    %v498 = vld [vmem:[#allocation2 + $0x78] sm:$0xff]
    %v499 = vld [vmem:[%s3] sm:$0x1]
    %v501 = vlaneseq
    %v502 = vshrl.u32 %v501, 7
    %v503 = vsub.s32 0, %v502
    %v504 = vrot.slane %v499, %v503
    %v506 = vadd.f32 %v483, %v504
    %v507 = vadd.f32 %v484, %v504
    %v508 = vadd.f32 %v485, %v504
    %v509 = vadd.f32 %v486, %v504
    %v510 = vadd.f32 %v487, %v504
    %v511 = vadd.f32 %v488, %v504
    %v512 = vadd.f32 %v489, %v504
    %v513 = vadd.f32 %v490, %v504
    %v514 = vadd.f32 %v491, %v504
    %v515 = vadd.f32 %v492, %v504
    %v516 = vadd.f32 %v493, %v504
    %v517 = vadd.f32 %v494, %v504
    %v518 = vadd.f32 %v495, %v504
    %v519 = vadd.f32 %v496, %v504
    %v520 = vadd.f32 %v497, %v504
    %v521 = vadd.f32 %v498, %v504
    %522 = vst [vmem:[%s4] sm:$0xff] %v506
    %523 = vst [vmem:[%s4 + $0x8] sm:$0xff] %v507
    %524 = vst [vmem:[%s4 + $0x10] sm:$0xff] %v508
    %525 = vst [vmem:[%s4 + $0x18] sm:$0xff] %v509
    %526 = vst [vmem:[%s4 + $0x20] sm:$0xff] %v510
    %527 = vst [vmem:[%s4 + $0x28] sm:$0xff] %v511
    %528 = vst [vmem:[%s4 + $0x30] sm:$0xff] %v512
    %529 = vst [vmem:[%s4 + $0x38] sm:$0xff] %v513
    %530 = vst [vmem:[%s4 + $0x40] sm:$0xff] %v514
    %531 = vst [vmem:[%s4 + $0x48] sm:$0xff] %v515
    %532 = vst [vmem:[%s4 + $0x50] sm:$0xff] %v516
    %533 = vst [vmem:[%s4 + $0x58] sm:$0xff] %v517
    %534 = vst [vmem:[%s4 + $0x60] sm:$0xff] %v518
    %535 = vst [vmem:[%s4 + $0x68] sm:$0xff] %v519
    %536 = vst [vmem:[%s4 + $0x70] sm:$0xff] %v520
    %537 = vst [vmem:[%s4 + $0x78] sm:$0xff] %v521
  $region25: #{graph_model_forward.3} parent=0 // pred_fallthru
    _
  // Predicated region
  $region26: #{graph_model_forward.3} parent=0 // pred_check
    _
  $region27: #{graph_model_forward.3} parent=0 // pred_check_branch
    %539 = sbr.rel (0) target = $region29
  $region28: #{graph_model_forward.3} parent=0 // pred_region
    _
  $region29: #{graph_model_forward.3} parent=0 // pred_fallthru
    _
  // Predicated region
  $region30: #{graph_model_forward.3} parent=0 // pred_check
    _
  $region31: #{graph_model_forward.3} parent=0 // pred_check_branch
    %541 = sbr.rel (0) target = $region33
  $region32: #{graph_model_forward.3} parent=0 // pred_region
    _
  $region33: #{graph_model_forward.3} parent=0 // pred_fallthru
    _

// kernel: graph_model_forward.2
$region0: #{graph_model_forward.2}
  #allocation0 [shape = 'u32[]', space=smem, size = 0x4, offset = 0x4, fixed_abs, tag = 'smem constant byte address 0x4 - core index']
  #allocation1 [shape = 'u32[144,128]{1,0:T(1,128)}', space=vmem, size = 0x12000, scoped, tag = 'internal scratch']
  #allocation2 [shape = 'f32[128,128]{1,0:T(8,128)}', space=vmem, size = 0x10000, scoped, tag = 'scratch operand']
  %s0 = inlined_call_operand.vmem [shape: bf16[128,128], index: 0, kind: input, shape index: {}]
  %s1 = inlined_call_operand.vmem [shape: bf16[128,8], index: 1, kind: input, shape index: {}]
  %s2 = inlined_call_operand.vmem [shape: bf16[8,128], index: 2, kind: input, shape index: {}]
  %s3 = inlined_call_operand.vmem [shape: f32[1,128], index: 3, kind: input, shape index: {}]
  %s4 = inlined_call_operand.vmem [shape: bf16[128,128], index: 4, kind: input, shape index: {}]
  %s5 = inlined_call_operand.vmem [shape: bf16[128,128], index: 5, kind: output, shape index: {0}]
  %s6 = inlined_call_operand.vmem [shape: f32[128,128], index: 6, kind: output, shape index: {1}]
  %7 = xla_tuple %s5, %s6
  %s8 = sld [smem:[#allocation0]]
  $region46: #{graph_model_forward.2} parent=0
    _
  %s10 = ssub.s32 1, %s8
  %s11 = scalar_select 0, %s10, %s8
  // Predicated region
  $region2: #{graph_model_forward.2} parent=0 // pred_check
    _
  $region3: #{graph_model_forward.2} parent=0 // pred_check_branch
    %13 = sbr.rel (0) target = $region5
  $region4: #{graph_model_forward.2} parent=0 // pred_region
    _
  $region5: #{graph_model_forward.2} parent=0 // pred_fallthru
    _
  // Predicated region
  $region6: #{graph_model_forward.2} parent=0 // pred_check
    _
  $region7: #{graph_model_forward.2} parent=0 // pred_check_branch
    %15 = sbr.rel (0) target = $region9
  $region8: #{graph_model_forward.2} parent=0 // pred_region
    _
  $region9: #{graph_model_forward.2} parent=0 // pred_fallthru
    _
  // Predicated region
  $region10: #{graph_model_forward.2} parent=0 // pred_check
    _
  $region11: #{graph_model_forward.2} parent=0 // pred_check_branch
    %17 = sbr.rel (0) target = $region13
  $region12: #{graph_model_forward.2} parent=0 // pred_region
    _
  $region13: #{graph_model_forward.2} parent=0 // pred_fallthru
    _
  // Predicated region
  $region14: #{graph_model_forward.2} parent=0 // pred_check
    _
  $region15: #{graph_model_forward.2} parent=0 // pred_check_branch
    %19 = sbr.rel (0) target = $region17
  $region16: #{graph_model_forward.2} parent=0 // pred_region
    _
  $region17: #{graph_model_forward.2} parent=0 // pred_fallthru
    _
  // Predicated region
  $region18: #{graph_model_forward.2} parent=0 // pred_check
    _
  $region19: #{graph_model_forward.2} parent=0 // pred_check_branch
    %21 = sbr.rel (0) target = $region21
  $region20: #{graph_model_forward.2} parent=0 // pred_region
    _
  $region21: #{graph_model_forward.2} parent=0 // pred_fallthru
    _
  %p23 = scmp.eq.s32.totalorder 0, 0
  // Predicated region
  $region22: #{graph_model_forward.2} parent=0 // pred_check
    %p24 = pneg %p23
  $region23: #{graph_model_forward.2} parent=0 // pred_check_branch
    %26 = sbr.rel (%p24) target = $region25
  $region24: #{graph_model_forward.2} parent=0 // pred_region
    %27 = vst [vmem:[#allocation2] sm:$0xff] 0.0
    %28 = vst [vmem:[#allocation2 + $0x8] sm:$0xff] 0.0
    %29 = vst [vmem:[#allocation2 + $0x10] sm:$0xff] 0.0
    %30 = vst [vmem:[#allocation2 + $0x18] sm:$0xff] 0.0
    %31 = vst [vmem:[#allocation2 + $0x20] sm:$0xff] 0.0
    %32 = vst [vmem:[#allocation2 + $0x28] sm:$0xff] 0.0
    %33 = vst [vmem:[#allocation2 + $0x30] sm:$0xff] 0.0
    %34 = vst [vmem:[#allocation2 + $0x38] sm:$0xff] 0.0
    %35 = vst [vmem:[#allocation2 + $0x40] sm:$0xff] 0.0
    %36 = vst [vmem:[#allocation2 + $0x48] sm:$0xff] 0.0
    %37 = vst [vmem:[#allocation2 + $0x50] sm:$0xff] 0.0
    %38 = vst [vmem:[#allocation2 + $0x58] sm:$0xff] 0.0
    %39 = vst [vmem:[#allocation2 + $0x60] sm:$0xff] 0.0
    %40 = vst [vmem:[#allocation2 + $0x68] sm:$0xff] 0.0
    %41 = vst [vmem:[#allocation2 + $0x70] sm:$0xff] 0.0
    %42 = vst [vmem:[#allocation2 + $0x78] sm:$0xff] 0.0
  $region25: #{graph_model_forward.2} parent=0 // pred_fallthru
    _
  %v43 = vld [vmem:[%s1] sm:$0xf]
  %v44 = vld [vmem:[%s1 + $0x4] sm:$0xf]
  %v45 = vld [vmem:[%s1 + $0x8] sm:$0xf]
  %v46 = vld [vmem:[%s1 + $0xc] sm:$0xf]
  %v47 = vld [vmem:[%s1 + $0x10] sm:$0xf]
  %v48 = vld [vmem:[%s1 + $0x14] sm:$0xf]
  %v49 = vld [vmem:[%s1 + $0x18] sm:$0xf]
  %v50 = vld [vmem:[%s1 + $0x1c] sm:$0xf]
  %v51 = vld [vmem:[%s1 + $0x20] sm:$0xf]
  %v52 = vld [vmem:[%s1 + $0x24] sm:$0xf]
  %v53 = vld [vmem:[%s1 + $0x28] sm:$0xf]
  %v54 = vld [vmem:[%s1 + $0x2c] sm:$0xf]
  %v55 = vld [vmem:[%s1 + $0x30] sm:$0xf]
  %v56 = vld [vmem:[%s1 + $0x34] sm:$0xf]
  %v57 = vld [vmem:[%s1 + $0x38] sm:$0xf]
  %v58 = vld [vmem:[%s1 + $0x3c] sm:$0xf]
  %v59 = vld [vmem:[%s2] sm:$0xf]
  %v76 = vunpack.c.l.b16 %v43
  %v77 = vunpack.c.l.b16 %v44
  %v78 = vunpack.c.l.b16 %v45
  %v79 = vunpack.c.l.b16 %v46
  %v80 = vunpack.c.l.b16 %v47
  %v81 = vunpack.c.l.b16 %v48
  %v82 = vunpack.c.l.b16 %v49
  %v83 = vunpack.c.l.b16 %v50
  %v84 = vunpack.c.l.b16 %v51
  %v85 = vunpack.c.l.b16 %v52
  %v86 = vunpack.c.l.b16 %v53
  %v87 = vunpack.c.l.b16 %v54
  %v88 = vunpack.c.l.b16 %v55
  %v89 = vunpack.c.l.b16 %v56
  %v90 = vunpack.c.l.b16 %v57
  %v91 = vunpack.c.l.b16 %v58
  %v92 = vpack.c.b16 %v77, %v76
  %v93 = vpack.c.b16 %v79, %v78
  %v94 = vpack.c.b16 %v81, %v80
  %v95 = vpack.c.b16 %v83, %v82
  %v96 = vpack.c.b16 %v85, %v84
  %v97 = vpack.c.b16 %v87, %v86
  %v98 = vpack.c.b16 %v89, %v88
  %v99 = vpack.c.b16 %v91, %v90
  %vm100 = vcmask 64512
  %v102 = vsel %vm100, %v92, 0
  %v105 = vsel %vm100, %v93, 0
  %v108 = vsel %vm100, %v94, 0
  %v111 = vsel %vm100, %v95, 0
  %v114 = vsel %vm100, %v96, 0
  %v117 = vsel %vm100, %v97, 0
  %v120 = vsel %vm100, %v98, 0
  %v123 = vsel %vm100, %v99, 0
  %vm125 = vcmask 1043456
  %v127 = vsel %vm125, %v59, 0
  %129 = vmatprep.subr.bf16.mxu0 0
  %130 = vmatpush1.bf16.msra.mxu0 0
  %131 = vmatprep.subr.bf16.mxu0 0
  %132 = vmatpush1.bf16.msra.mxu0 0
  %133 = vmatprep.subr.bf16.mxu0 0
  %134 = vmatpush1.bf16.msra.mxu0 0
  %135 = vmatprep.subr.bf16.mxu0 0
  %136 = vmatpush1.bf16.msra.mxu0 0
  %137 = vmatprep.subr.bf16.mxu0 0
  %138 = vmatpush1.bf16.msra.mxu0 0
  %139 = vmatprep.subr.bf16.mxu0 0
  %140 = vmatpush1.bf16.msra.mxu0 0
  %141 = vmatprep.subr.bf16.mxu0 0
  %142 = vmatpush1.bf16.msra.mxu0 0
  %143 = vmatprep.subr.bf16.mxu0 0
  %144 = vmatpush1.bf16.msra.mxu0 %v127
  %145 = vmatprep.subr.bf16.mxu0 0
  %146 = vmatpush2.bf16.msra.mxu0 0
  %147 = vmatprep.subr.bf16.mxu0 0
  %148 = vmatpush2.bf16.msra.mxu0 0
  %149 = vmatprep.subr.bf16.mxu0 0
  %150 = vmatpush2.bf16.msra.mxu0 0
  %151 = vmatprep.subr.bf16.mxu0 0
  %152 = vmatpush2.bf16.msra.mxu0 0
  %153 = vmatprep.subr.bf16.mxu0 0
  %154 = vmatpush2.bf16.msra.mxu0 0
  %155 = vmatprep.subr.bf16.mxu0 0
  %156 = vmatpush2.bf16.msra.mxu0 0
  %157 = vmatprep.subr.bf16.mxu0 0
  %158 = vmatpush2.bf16.msra.mxu0 0
  %159 = vmatprep.subr.bf16.mxu0 0
  %160 = vmatpush2.bf16.msra.mxu0 0
  %161 = vmatprep.mubr.bf16.mxu0 0
  %162 = vmatmul.mubr.bf16.gmra.mxu0 %v102
  %v163 = vpop.f32.mrf.mxu0
  %v164 = vadd.f32 0.0, %v163
  %v165 = vpop.f32.mrf.mxu0
  %v166 = vpop.f32.mrf.mxu0
  %v167 = vadd.f32 0.0, %v166
  %v168 = vpop.f32.mrf.mxu0
  %169 = vmatprep.mubr.bf16.mxu0 0
  %170 = vmatmul.mubr.bf16.gmra.mxu0 %v105
  %v171 = vpop.f32.mrf.mxu0
  %v172 = vadd.f32 0.0, %v171
  %v173 = vpop.f32.mrf.mxu0
  %v174 = vpop.f32.mrf.mxu0
  %v175 = vadd.f32 0.0, %v174
  %v176 = vpop.f32.mrf.mxu0
  %177 = vmatprep.mubr.bf16.mxu0 0
  %178 = vmatmul.mubr.bf16.gmra.mxu0 %v108
  %v179 = vpop.f32.mrf.mxu0
  %v180 = vadd.f32 0.0, %v179
  %v181 = vpop.f32.mrf.mxu0
  %v182 = vpop.f32.mrf.mxu0
  %v183 = vadd.f32 0.0, %v182
  %v184 = vpop.f32.mrf.mxu0
  %185 = vmatprep.mubr.bf16.mxu0 0
  %186 = vmatmul.mubr.bf16.gmra.mxu0 %v111
  %v187 = vpop.f32.mrf.mxu0
  %v188 = vadd.f32 0.0, %v187
  %v189 = vpop.f32.mrf.mxu0
  %v190 = vpop.f32.mrf.mxu0
  %v191 = vadd.f32 0.0, %v190
  %v192 = vpop.f32.mrf.mxu0
  %193 = vmatprep.mubr.bf16.mxu0 0
  %194 = vmatmul.mubr.bf16.gmra.mxu0 %v114
  %v195 = vpop.f32.mrf.mxu0
  %v196 = vadd.f32 0.0, %v195
  %v197 = vpop.f32.mrf.mxu0
  %v198 = vpop.f32.mrf.mxu0
  %v199 = vadd.f32 0.0, %v198
  %v200 = vpop.f32.mrf.mxu0
  %201 = vmatprep.mubr.bf16.mxu0 0
  %202 = vmatmul.mubr.bf16.gmra.mxu0 %v117
  %v203 = vpop.f32.mrf.mxu0
  %v204 = vadd.f32 0.0, %v203
  %v205 = vpop.f32.mrf.mxu0
  %v206 = vpop.f32.mrf.mxu0
  %v207 = vadd.f32 0.0, %v206
  %v208 = vpop.f32.mrf.mxu0
  %209 = vmatprep.mubr.bf16.mxu0 0
  %210 = vmatmul.mubr.bf16.gmra.mxu0 %v120
  %v211 = vpop.f32.mrf.mxu0
  %v212 = vadd.f32 0.0, %v211
  %v213 = vpop.f32.mrf.mxu0
  %v214 = vpop.f32.mrf.mxu0
  %v215 = vadd.f32 0.0, %v214
  %v216 = vpop.f32.mrf.mxu0
  %217 = vmatprep.mubr.bf16.mxu0 0
  %218 = vmatmul.mubr.bf16.gmra.mxu0 %v123
  %v219 = vpop.f32.mrf.mxu0
  %v220 = vadd.f32 0.0, %v219
  %v221 = vpop.f32.mrf.mxu0
  %v222 = vpop.f32.mrf.mxu0
  %v223 = vadd.f32 0.0, %v222
  %v224 = vpop.f32.mrf.mxu0
  %225 = vdwg.mxu0
  %v226 = vld [vmem:[#allocation2] sm:$0xff]
  %v227 = vld [vmem:[#allocation2 + $0x8] sm:$0xff]
  %v228 = vld [vmem:[#allocation2 + $0x10] sm:$0xff]
  %v229 = vld [vmem:[#allocation2 + $0x18] sm:$0xff]
  %v230 = vld [vmem:[#allocation2 + $0x20] sm:$0xff]
  %v231 = vld [vmem:[#allocation2 + $0x28] sm:$0xff]
  %v232 = vld [vmem:[#allocation2 + $0x30] sm:$0xff]
  %v233 = vld [vmem:[#allocation2 + $0x38] sm:$0xff]
  %v234 = vld [vmem:[#allocation2 + $0x40] sm:$0xff]
  %v235 = vld [vmem:[#allocation2 + $0x48] sm:$0xff]
  %v236 = vld [vmem:[#allocation2 + $0x50] sm:$0xff]
  %v237 = vld [vmem:[#allocation2 + $0x58] sm:$0xff]
  %v238 = vld [vmem:[#allocation2 + $0x60] sm:$0xff]
  %v239 = vld [vmem:[#allocation2 + $0x68] sm:$0xff]
  %v240 = vld [vmem:[#allocation2 + $0x70] sm:$0xff]
  %v241 = vld [vmem:[#allocation2 + $0x78] sm:$0xff]
  %v242 = vld [vmem:[%s0] sm:$0xf]
  %v243 = vld [vmem:[%s0 + $0x4] sm:$0xf]
  %v244 = vld [vmem:[%s0 + $0x8] sm:$0xf]
  %v245 = vld [vmem:[%s0 + $0xc] sm:$0xf]
  %v246 = vld [vmem:[%s0 + $0x10] sm:$0xf]
  %v247 = vld [vmem:[%s0 + $0x14] sm:$0xf]
  %v248 = vld [vmem:[%s0 + $0x18] sm:$0xf]
  %v249 = vld [vmem:[%s0 + $0x1c] sm:$0xf]
  %v250 = vld [vmem:[%s0 + $0x20] sm:$0xf]
  %v251 = vld [vmem:[%s0 + $0x24] sm:$0xf]
  %v252 = vld [vmem:[%s0 + $0x28] sm:$0xf]
  %v253 = vld [vmem:[%s0 + $0x2c] sm:$0xf]
  %v254 = vld [vmem:[%s0 + $0x30] sm:$0xf]
  %v255 = vld [vmem:[%s0 + $0x34] sm:$0xf]
  %v256 = vld [vmem:[%s0 + $0x38] sm:$0xf]
  %v257 = vld [vmem:[%s0 + $0x3c] sm:$0xf]
  %v258 = vpack.c.bf16 %v167, %v164
  %v259 = vpack.c.bf16 %v175, %v172
  %v260 = vpack.c.bf16 %v183, %v180
  %v261 = vpack.c.bf16 %v191, %v188
  %v262 = vpack.c.bf16 %v199, %v196
  %v263 = vpack.c.bf16 %v207, %v204
  %v264 = vpack.c.bf16 %v215, %v212
  %v265 = vpack.c.bf16 %v223, %v220
  %v282 = vunpack.c.l.b16 %v242
  %v283 = vunpack.c.l.b16 %v243
  %v284 = vunpack.c.l.b16 %v244
  %v285 = vunpack.c.l.b16 %v245
  %v286 = vunpack.c.l.b16 %v246
  %v287 = vunpack.c.l.b16 %v247
  %v288 = vunpack.c.l.b16 %v248
  %v289 = vunpack.c.l.b16 %v249
  %v290 = vunpack.c.l.b16 %v250
  %v291 = vunpack.c.l.b16 %v251
  %v292 = vunpack.c.l.b16 %v252
  %v293 = vunpack.c.l.b16 %v253
  %v294 = vunpack.c.l.b16 %v254
  %v295 = vunpack.c.l.b16 %v255
  %v296 = vunpack.c.l.b16 %v256
  %v297 = vunpack.c.l.b16 %v257
  %v298 = vpack.c.b16 %v283, %v282
  %v299 = vpack.c.b16 %v285, %v284
  %v300 = vpack.c.b16 %v287, %v286
  %v301 = vpack.c.b16 %v289, %v288
  %v302 = vpack.c.b16 %v291, %v290
  %v303 = vpack.c.b16 %v293, %v292
  %v304 = vpack.c.b16 %v295, %v294
  %v305 = vpack.c.b16 %v297, %v296
  %314 = vmatprep.subr.bf16.mxu0 0
  %315 = vmatpush1.bf16.msra.mxu0 %v265
  %316 = vmatprep.subr.bf16.mxu0 0
  %317 = vmatpush1.bf16.msra.mxu0 %v264
  %318 = vmatprep.subr.bf16.mxu0 0
  %319 = vmatpush1.bf16.msra.mxu0 %v263
  %320 = vmatprep.subr.bf16.mxu0 0
  %321 = vmatpush1.bf16.msra.mxu0 %v262
  %322 = vmatprep.subr.bf16.mxu0 0
  %323 = vmatpush1.bf16.msra.mxu0 %v261
  %324 = vmatprep.subr.bf16.mxu0 0
  %325 = vmatpush1.bf16.msra.mxu0 %v260
  %326 = vmatprep.subr.bf16.mxu0 0
  %327 = vmatpush1.bf16.msra.mxu0 %v259
  %328 = vmatprep.subr.bf16.mxu0 0
  %329 = vmatpush1.bf16.msra.mxu0 %v258
  %330 = vmatprep.subr.bf16.mxu0 0
  %331 = vmatpush2.bf16.msra.mxu0 0
  %332 = vmatprep.subr.bf16.mxu0 0
  %333 = vmatpush2.bf16.msra.mxu0 0
  %334 = vmatprep.subr.bf16.mxu0 0
  %335 = vmatpush2.bf16.msra.mxu0 0
  %336 = vmatprep.subr.bf16.mxu0 0
  %337 = vmatpush2.bf16.msra.mxu0 0
  %338 = vmatprep.subr.bf16.mxu0 0
  %339 = vmatpush2.bf16.msra.mxu0 0
  %340 = vmatprep.subr.bf16.mxu0 0
  %341 = vmatpush2.bf16.msra.mxu0 0
  %342 = vmatprep.subr.bf16.mxu0 0
  %343 = vmatpush2.bf16.msra.mxu0 0
  %344 = vmatprep.subr.bf16.mxu0 0
  %345 = vmatpush2.bf16.msra.mxu0 0
  %346 = vmatprep.mubr.bf16.mxu0 0
  %347 = vmatmul.mubr.bf16.gmra.mxu0 %v298
  %v348 = vpop.f32.mrf.mxu0
  %v349 = vadd.f32 0.0, %v348
  %v350 = vpop.f32.mrf.mxu0
  %v351 = vpop.f32.mrf.mxu0
  %v352 = vadd.f32 0.0, %v351
  %v353 = vpop.f32.mrf.mxu0
  %354 = vmatprep.mubr.bf16.mxu0 0
  %355 = vmatmul.mubr.bf16.gmra.mxu0 %v299
  %v356 = vpop.f32.mrf.mxu0
  %v357 = vadd.f32 0.0, %v356
  %v358 = vpop.f32.mrf.mxu0
  %v359 = vpop.f32.mrf.mxu0
  %v360 = vadd.f32 0.0, %v359
  %v361 = vpop.f32.mrf.mxu0
  %362 = vmatprep.mubr.bf16.mxu0 0
  %363 = vmatmul.mubr.bf16.gmra.mxu0 %v300
  %v364 = vpop.f32.mrf.mxu0
  %v365 = vadd.f32 0.0, %v364
  %v366 = vpop.f32.mrf.mxu0
  %v367 = vpop.f32.mrf.mxu0
  %v368 = vadd.f32 0.0, %v367
  %v369 = vpop.f32.mrf.mxu0
  %370 = vmatprep.mubr.bf16.mxu0 0
  %371 = vmatmul.mubr.bf16.gmra.mxu0 %v301
  %v372 = vpop.f32.mrf.mxu0
  %v373 = vadd.f32 0.0, %v372
  %v374 = vpop.f32.mrf.mxu0
  %v375 = vpop.f32.mrf.mxu0
  %v376 = vadd.f32 0.0, %v375
  %v377 = vpop.f32.mrf.mxu0
  %378 = vmatprep.mubr.bf16.mxu0 0
  %379 = vmatmul.mubr.bf16.gmra.mxu0 %v302
  %v380 = vpop.f32.mrf.mxu0
  %v381 = vadd.f32 0.0, %v380
  %v382 = vpop.f32.mrf.mxu0
  %v383 = vpop.f32.mrf.mxu0
  %v384 = vadd.f32 0.0, %v383
  %v385 = vpop.f32.mrf.mxu0
  %386 = vmatprep.mubr.bf16.mxu0 0
  %387 = vmatmul.mubr.bf16.gmra.mxu0 %v303
  %v388 = vpop.f32.mrf.mxu0
  %v389 = vadd.f32 0.0, %v388
  %v390 = vpop.f32.mrf.mxu0
  %v391 = vpop.f32.mrf.mxu0
  %v392 = vadd.f32 0.0, %v391
  %v393 = vpop.f32.mrf.mxu0
  %394 = vmatprep.mubr.bf16.mxu0 0
  %395 = vmatmul.mubr.bf16.gmra.mxu0 %v304
  %v396 = vpop.f32.mrf.mxu0
  %v397 = vadd.f32 0.0, %v396
  %v398 = vpop.f32.mrf.mxu0
  %v399 = vpop.f32.mrf.mxu0
  %v400 = vadd.f32 0.0, %v399
  %v401 = vpop.f32.mrf.mxu0
  %402 = vmatprep.mubr.bf16.mxu0 0
  %403 = vmatmul.mubr.bf16.gmra.mxu0 %v305
  %v404 = vpop.f32.mrf.mxu0
  %v405 = vadd.f32 0.0, %v404
  %v406 = vpop.f32.mrf.mxu0
  %v407 = vpop.f32.mrf.mxu0
  %v408 = vadd.f32 0.0, %v407
  %v409 = vpop.f32.mrf.mxu0
  %410 = vdwg.mxu0
  %v411 = vadd.f32 %v226, %v349
  %v412 = vadd.f32 %v227, %v352
  %v413 = vadd.f32 %v228, %v357
  %v414 = vadd.f32 %v229, %v360
  %v415 = vadd.f32 %v230, %v365
  %v416 = vadd.f32 %v231, %v368
  %v417 = vadd.f32 %v232, %v373
  %v418 = vadd.f32 %v233, %v376
  %v419 = vadd.f32 %v234, %v381
  %v420 = vadd.f32 %v235, %v384
  %v421 = vadd.f32 %v236, %v389
  %v422 = vadd.f32 %v237, %v392
  %v423 = vadd.f32 %v238, %v397
  %v424 = vadd.f32 %v239, %v400
  %v425 = vadd.f32 %v240, %v405
  %v426 = vadd.f32 %v241, %v408
  %427 = vst [vmem:[#allocation2] sm:$0xff] %v411
  %428 = vst [vmem:[#allocation2 + $0x8] sm:$0xff] %v412
  %429 = vst [vmem:[#allocation2 + $0x10] sm:$0xff] %v413
  %430 = vst [vmem:[#allocation2 + $0x18] sm:$0xff] %v414
  %431 = vst [vmem:[#allocation2 + $0x20] sm:$0xff] %v415
  %432 = vst [vmem:[#allocation2 + $0x28] sm:$0xff] %v416
  %433 = vst [vmem:[#allocation2 + $0x30] sm:$0xff] %v417
  %434 = vst [vmem:[#allocation2 + $0x38] sm:$0xff] %v418
  %435 = vst [vmem:[#allocation2 + $0x40] sm:$0xff] %v419
  %436 = vst [vmem:[#allocation2 + $0x48] sm:$0xff] %v420
  %437 = vst [vmem:[#allocation2 + $0x50] sm:$0xff] %v421
  %438 = vst [vmem:[#allocation2 + $0x58] sm:$0xff] %v422
  %439 = vst [vmem:[#allocation2 + $0x60] sm:$0xff] %v423
  %440 = vst [vmem:[#allocation2 + $0x68] sm:$0xff] %v424
  %441 = vst [vmem:[#allocation2 + $0x70] sm:$0xff] %v425
  %442 = vst [vmem:[#allocation2 + $0x78] sm:$0xff] %v426
  // Predicated region
  $region26: #{graph_model_forward.2} parent=0 // pred_check
    %p443 = pneg %p23
  $region27: #{graph_model_forward.2} parent=0 // pred_check_branch
    %445 = sbr.rel (%p443) target = $region29
  $region28: #{graph_model_forward.2} parent=0 // pred_region
    %v446 = vld [vmem:[#allocation2] sm:$0xff]
    %v447 = vld [vmem:[#allocation2 + $0x8] sm:$0xff]
    %v448 = vld [vmem:[#allocation2 + $0x10] sm:$0xff]
    %v449 = vld [vmem:[#allocation2 + $0x18] sm:$0xff]
    %v450 = vld [vmem:[#allocation2 + $0x20] sm:$0xff]
    %v451 = vld [vmem:[#allocation2 + $0x28] sm:$0xff]
    %v452 = vld [vmem:[#allocation2 + $0x30] sm:$0xff]
    %v453 = vld [vmem:[#allocation2 + $0x38] sm:$0xff]
    %v454 = vld [vmem:[#allocation2 + $0x40] sm:$0xff]
    %v455 = vld [vmem:[#allocation2 + $0x48] sm:$0xff]
    %v456 = vld [vmem:[#allocation2 + $0x50] sm:$0xff]
    %v457 = vld [vmem:[#allocation2 + $0x58] sm:$0xff]
    %v458 = vld [vmem:[#allocation2 + $0x60] sm:$0xff]
    %v459 = vld [vmem:[#allocation2 + $0x68] sm:$0xff]
    %v460 = vld [vmem:[#allocation2 + $0x70] sm:$0xff]
    %v461 = vld [vmem:[#allocation2 + $0x78] sm:$0xff]
    %v462 = vld [vmem:[%s3] sm:$0x1]
    %v464 = vlaneseq
    %v465 = vshrl.u32 %v464, 7
    %v466 = vsub.s32 0, %v465
    %v467 = vrot.slane %v462, %v466
    %v469 = vadd.f32 %v446, %v467
    %v470 = vadd.f32 %v447, %v467
    %v471 = vadd.f32 %v448, %v467
    %v472 = vadd.f32 %v449, %v467
    %v473 = vadd.f32 %v450, %v467
    %v474 = vadd.f32 %v451, %v467
    %v475 = vadd.f32 %v452, %v467
    %v476 = vadd.f32 %v453, %v467
    %v477 = vadd.f32 %v454, %v467
    %v478 = vadd.f32 %v455, %v467
    %v479 = vadd.f32 %v456, %v467
    %v480 = vadd.f32 %v457, %v467
    %v481 = vadd.f32 %v458, %v467
    %v482 = vadd.f32 %v459, %v467
    %v483 = vadd.f32 %v460, %v467
    %v484 = vadd.f32 %v461, %v467
    %v485 = vmax.f32 %v469, 0.0
    %v486 = vmax.f32 %v470, 0.0
    %v487 = vmax.f32 %v471, 0.0
    %v488 = vmax.f32 %v472, 0.0
    %v489 = vmax.f32 %v473, 0.0
    %v490 = vmax.f32 %v474, 0.0
    %v491 = vmax.f32 %v475, 0.0
    %v492 = vmax.f32 %v476, 0.0
    %v493 = vmax.f32 %v477, 0.0
    %v494 = vmax.f32 %v478, 0.0
    %v495 = vmax.f32 %v479, 0.0
    %v496 = vmax.f32 %v480, 0.0
    %v497 = vmax.f32 %v481, 0.0
    %v498 = vmax.f32 %v482, 0.0
    %v499 = vmax.f32 %v483, 0.0
    %v500 = vmax.f32 %v484, 0.0
    %v501 = vpack.c.bf16 %v486, %v485
    %v502 = vpack.c.bf16 %v488, %v487
    %v503 = vpack.c.bf16 %v490, %v489
    %v504 = vpack.c.bf16 %v492, %v491
    %v505 = vpack.c.bf16 %v494, %v493
    %v506 = vpack.c.bf16 %v496, %v495
    %v507 = vpack.c.bf16 %v498, %v497
    %v508 = vpack.c.bf16 %v500, %v499
    %v517 = vunpack.c.l.b16 %v501
    %v518 = vunpack.c.h.b16 %v501
    %v519 = vunpack.c.l.b16 %v502
    %v520 = vunpack.c.h.b16 %v502
    %v521 = vunpack.c.l.b16 %v503
    %v522 = vunpack.c.h.b16 %v503
    %v523 = vunpack.c.l.b16 %v504
    %v524 = vunpack.c.h.b16 %v504
    %v525 = vunpack.c.l.b16 %v505
    %v526 = vunpack.c.h.b16 %v505
    %v527 = vunpack.c.l.b16 %v506
    %v528 = vunpack.c.h.b16 %v506
    %v529 = vunpack.c.l.b16 %v507
    %v530 = vunpack.c.h.b16 %v507
    %v531 = vunpack.c.l.b16 %v508
    %v532 = vunpack.c.h.b16 %v508
    %v533 = vpack.c.b16 %v517, %v517
    %v534 = vpack.c.b16 %v518, %v518
    %v535 = vpack.c.b16 %v519, %v519
    %v536 = vpack.c.b16 %v520, %v520
    %v537 = vpack.c.b16 %v521, %v521
    %v538 = vpack.c.b16 %v522, %v522
    %v539 = vpack.c.b16 %v523, %v523
    %v540 = vpack.c.b16 %v524, %v524
    %v541 = vpack.c.b16 %v525, %v525
    %v542 = vpack.c.b16 %v526, %v526
    %v543 = vpack.c.b16 %v527, %v527
    %v544 = vpack.c.b16 %v528, %v528
    %v545 = vpack.c.b16 %v529, %v529
    %v546 = vpack.c.b16 %v530, %v530
    %v547 = vpack.c.b16 %v531, %v531
    %v548 = vpack.c.b16 %v532, %v532
    %565 = vst [vmem:[%s5] sm:$0xf] %v533
    %566 = vst [vmem:[%s5 + $0x4] sm:$0xf] %v534
    %567 = vst [vmem:[%s5 + $0x8] sm:$0xf] %v535
    %568 = vst [vmem:[%s5 + $0xc] sm:$0xf] %v536
    %569 = vst [vmem:[%s5 + $0x10] sm:$0xf] %v537
    %570 = vst [vmem:[%s5 + $0x14] sm:$0xf] %v538
    %571 = vst [vmem:[%s5 + $0x18] sm:$0xf] %v539
    %572 = vst [vmem:[%s5 + $0x1c] sm:$0xf] %v540
    %573 = vst [vmem:[%s5 + $0x20] sm:$0xf] %v541
    %574 = vst [vmem:[%s5 + $0x24] sm:$0xf] %v542
    %575 = vst [vmem:[%s5 + $0x28] sm:$0xf] %v543
    %576 = vst [vmem:[%s5 + $0x2c] sm:$0xf] %v544
    %577 = vst [vmem:[%s5 + $0x30] sm:$0xf] %v545
    %578 = vst [vmem:[%s5 + $0x34] sm:$0xf] %v546
    %579 = vst [vmem:[%s5 + $0x38] sm:$0xf] %v547
    %580 = vst [vmem:[%s5 + $0x3c] sm:$0xf] %v548
    %v581 = vld [vmem:[%s4] sm:$0xf]
    %v582 = vld [vmem:[%s4 + $0x4] sm:$0xf]
    %v583 = vld [vmem:[%s4 + $0x8] sm:$0xf]
    %v584 = vld [vmem:[%s4 + $0xc] sm:$0xf]
    %v585 = vld [vmem:[%s4 + $0x10] sm:$0xf]
    %v586 = vld [vmem:[%s4 + $0x14] sm:$0xf]
    %v587 = vld [vmem:[%s4 + $0x18] sm:$0xf]
    %v588 = vld [vmem:[%s4 + $0x1c] sm:$0xf]
    %v589 = vld [vmem:[%s4 + $0x20] sm:$0xf]
    %v590 = vld [vmem:[%s4 + $0x24] sm:$0xf]
    %v591 = vld [vmem:[%s4 + $0x28] sm:$0xf]
    %v592 = vld [vmem:[%s4 + $0x2c] sm:$0xf]
    %v593 = vld [vmem:[%s4 + $0x30] sm:$0xf]
    %v594 = vld [vmem:[%s4 + $0x34] sm:$0xf]
    %v595 = vld [vmem:[%s4 + $0x38] sm:$0xf]
    %v596 = vld [vmem:[%s4 + $0x3c] sm:$0xf]
    %v613 = vunpack.c.l.b16 %v581
    %v614 = vunpack.c.l.b16 %v582
    %v615 = vunpack.c.l.b16 %v583
    %v616 = vunpack.c.l.b16 %v584
    %v617 = vunpack.c.l.b16 %v585
    %v618 = vunpack.c.l.b16 %v586
    %v619 = vunpack.c.l.b16 %v587
    %v620 = vunpack.c.l.b16 %v588
    %v621 = vunpack.c.l.b16 %v589
    %v622 = vunpack.c.l.b16 %v590
    %v623 = vunpack.c.l.b16 %v591
    %v624 = vunpack.c.l.b16 %v592
    %v625 = vunpack.c.l.b16 %v593
    %v626 = vunpack.c.l.b16 %v594
    %v627 = vunpack.c.l.b16 %v595
    %v628 = vunpack.c.l.b16 %v596
    %v629 = vpack.c.b16 %v614, %v613
    %v630 = vpack.c.b16 %v616, %v615
    %v631 = vpack.c.b16 %v618, %v617
    %v632 = vpack.c.b16 %v620, %v619
    %v633 = vpack.c.b16 %v622, %v621
    %v634 = vpack.c.b16 %v624, %v623
    %v635 = vpack.c.b16 %v626, %v625
    %v636 = vpack.c.b16 %v628, %v627
    %645 = vmatprep.subr.bf16.mxu0 0
    %646 = vmatpush1.bf16.msra.mxu0 %v636
    %647 = vmatprep.subr.bf16.mxu0 0
    %648 = vmatpush1.bf16.msra.mxu0 %v635
    %649 = vmatprep.subr.bf16.mxu0 0
    %650 = vmatpush1.bf16.msra.mxu0 %v634
    %651 = vmatprep.subr.bf16.mxu0 0
    %652 = vmatpush1.bf16.msra.mxu0 %v633
    %653 = vmatprep.subr.bf16.mxu0 0
    %654 = vmatpush1.bf16.msra.mxu0 %v632
    %655 = vmatprep.subr.bf16.mxu0 0
    %656 = vmatpush1.bf16.msra.mxu0 %v631
    %657 = vmatprep.subr.bf16.mxu0 0
    %658 = vmatpush1.bf16.msra.mxu0 %v630
    %659 = vmatprep.subr.bf16.mxu0 0
    %660 = vmatpush1.bf16.msra.mxu0 %v629
    %661 = vmatprep.subr.bf16.mxu0 0
    %662 = vmatpush2.bf16.msra.mxu0 0
    %663 = vmatprep.subr.bf16.mxu0 0
    %664 = vmatpush2.bf16.msra.mxu0 0
    %665 = vmatprep.subr.bf16.mxu0 0
    %666 = vmatpush2.bf16.msra.mxu0 0
    %667 = vmatprep.subr.bf16.mxu0 0
    %668 = vmatpush2.bf16.msra.mxu0 0
    %669 = vmatprep.subr.bf16.mxu0 0
    %670 = vmatpush2.bf16.msra.mxu0 0
    %671 = vmatprep.subr.bf16.mxu0 0
    %672 = vmatpush2.bf16.msra.mxu0 0
    %673 = vmatprep.subr.bf16.mxu0 0
    %674 = vmatpush2.bf16.msra.mxu0 0
    %675 = vmatprep.subr.bf16.mxu0 0
    %676 = vmatpush2.bf16.msra.mxu0 0
    %677 = vmatprep.mubr.bf16.mxu0 0
    %678 = vmatmul.mubr.bf16.gmra.mxu0 %v501
    %v679 = vpop.f32.mrf.mxu0
    %v680 = vadd.f32 0.0, %v679
    %v681 = vpop.f32.mrf.mxu0
    %v682 = vpop.f32.mrf.mxu0
    %v683 = vadd.f32 0.0, %v682
    %v684 = vpop.f32.mrf.mxu0
    %685 = vmatprep.mubr.bf16.mxu0 0
    %686 = vmatmul.mubr.bf16.gmra.mxu0 %v502
    %v687 = vpop.f32.mrf.mxu0
    %v688 = vadd.f32 0.0, %v687
    %v689 = vpop.f32.mrf.mxu0
    %v690 = vpop.f32.mrf.mxu0
    %v691 = vadd.f32 0.0, %v690
    %v692 = vpop.f32.mrf.mxu0
    %693 = vmatprep.mubr.bf16.mxu0 0
    %694 = vmatmul.mubr.bf16.gmra.mxu0 %v503
    %v695 = vpop.f32.mrf.mxu0
    %v696 = vadd.f32 0.0, %v695
    %v697 = vpop.f32.mrf.mxu0
    %v698 = vpop.f32.mrf.mxu0
    %v699 = vadd.f32 0.0, %v698
    %v700 = vpop.f32.mrf.mxu0
    %701 = vmatprep.mubr.bf16.mxu0 0
    %702 = vmatmul.mubr.bf16.gmra.mxu0 %v504
    %v703 = vpop.f32.mrf.mxu0
    %v704 = vadd.f32 0.0, %v703
    %v705 = vpop.f32.mrf.mxu0
    %v706 = vpop.f32.mrf.mxu0
    %v707 = vadd.f32 0.0, %v706
    %v708 = vpop.f32.mrf.mxu0
    %709 = vmatprep.mubr.bf16.mxu0 0
    %710 = vmatmul.mubr.bf16.gmra.mxu0 %v505
    %v711 = vpop.f32.mrf.mxu0
    %v712 = vadd.f32 0.0, %v711
    %v713 = vpop.f32.mrf.mxu0
    %v714 = vpop.f32.mrf.mxu0
    %v715 = vadd.f32 0.0, %v714
    %v716 = vpop.f32.mrf.mxu0
    %717 = vmatprep.mubr.bf16.mxu0 0
    %718 = vmatmul.mubr.bf16.gmra.mxu0 %v506
    %v719 = vpop.f32.mrf.mxu0
    %v720 = vadd.f32 0.0, %v719
    %v721 = vpop.f32.mrf.mxu0
    %v722 = vpop.f32.mrf.mxu0
    %v723 = vadd.f32 0.0, %v722
    %v724 = vpop.f32.mrf.mxu0
    %725 = vmatprep.mubr.bf16.mxu0 0
    %726 = vmatmul.mubr.bf16.gmra.mxu0 %v507
    %v727 = vpop.f32.mrf.mxu0
    %v728 = vadd.f32 0.0, %v727
    %v729 = vpop.f32.mrf.mxu0
    %v730 = vpop.f32.mrf.mxu0
    %v731 = vadd.f32 0.0, %v730
    %v732 = vpop.f32.mrf.mxu0
    %733 = vmatprep.mubr.bf16.mxu0 0
    %734 = vmatmul.mubr.bf16.gmra.mxu0 %v508
    %v735 = vpop.f32.mrf.mxu0
    %v736 = vadd.f32 0.0, %v735
    %v737 = vpop.f32.mrf.mxu0
    %v738 = vpop.f32.mrf.mxu0
    %v739 = vadd.f32 0.0, %v738
    %v740 = vpop.f32.mrf.mxu0
    %741 = vdwg.mxu0
    %742 = vst [vmem:[%s6] sm:$0xff] %v680
    %743 = vst [vmem:[%s6 + $0x8] sm:$0xff] %v683
    %744 = vst [vmem:[%s6 + $0x10] sm:$0xff] %v688
    %745 = vst [vmem:[%s6 + $0x18] sm:$0xff] %v691
    %746 = vst [vmem:[%s6 + $0x20] sm:$0xff] %v696
    %747 = vst [vmem:[%s6 + $0x28] sm:$0xff] %v699
    %748 = vst [vmem:[%s6 + $0x30] sm:$0xff] %v704
    %749 = vst [vmem:[%s6 + $0x38] sm:$0xff] %v707
    %750 = vst [vmem:[%s6 + $0x40] sm:$0xff] %v712
    %751 = vst [vmem:[%s6 + $0x48] sm:$0xff] %v715
    %752 = vst [vmem:[%s6 + $0x50] sm:$0xff] %v720
    %753 = vst [vmem:[%s6 + $0x58] sm:$0xff] %v723
    %754 = vst [vmem:[%s6 + $0x60] sm:$0xff] %v728
    %755 = vst [vmem:[%s6 + $0x68] sm:$0xff] %v731
    %756 = vst [vmem:[%s6 + $0x70] sm:$0xff] %v736
    %757 = vst [vmem:[%s6 + $0x78] sm:$0xff] %v739
  $region29: #{graph_model_forward.2} parent=0 // pred_fallthru
    _
  // Predicated region
  $region30: #{graph_model_forward.2} parent=0 // pred_check
    _
  $region31: #{graph_model_forward.2} parent=0 // pred_check_branch
    %759 = sbr.rel (0) target = $region33
  $region32: #{graph_model_forward.2} parent=0 // pred_region
    _
  $region33: #{graph_model_forward.2} parent=0 // pred_fallthru
    _
  // Predicated region
  $region34: #{graph_model_forward.2} parent=0 // pred_check
    _
  $region35: #{graph_model_forward.2} parent=0 // pred_check_branch
    %761 = sbr.rel (0) target = $region37
  $region36: #{graph_model_forward.2} parent=0 // pred_region
    _
  $region37: #{graph_model_forward.2} parent=0 // pred_fallthru
    _
  // Predicated region
  $region38: #{graph_model_forward.2} parent=0 // pred_check
    _
  $region39: #{graph_model_forward.2} parent=0 // pred_check_branch
    %763 = sbr.rel (0) target = $region41
  $region40: #{graph_model_forward.2} parent=0 // pred_region
    _
  $region41: #{graph_model_forward.2} parent=0 // pred_fallthru
    _
  // Predicated region
  $region42: #{graph_model_forward.2} parent=0 // pred_check
    _
  $region43: #{graph_model_forward.2} parent=0 // pred_check_branch
    %765 = sbr.rel (0) target = $region45
  $region44: #{graph_model_forward.2} parent=0 // pred_region
    _
  $region45: #{graph_model_forward.2} parent=0 // pred_fallthru
    _

</llo_original>
